<compile_context>
chip_gen: v7x
topology: tpu7x:2x2x1
jax: 0.10.0
libtpu: 0.0.40
codegen_flags: <defaults>
</compile_context>

<pallas_src>
import jax
import jax.numpy as jnp
from jax import lax
from jax.experimental import pallas as pl
from jax.experimental.pallas import tpu as pltpu

GAMMA = 10.0
_LANE = 128
_FILT_BUDGET_BYTES = 4 * 1024 * 1024  # target size of one (TQ, F, TM) f32 filter chunk


def _interaction_kernel(cq_ref, ck_ref, xt_ref, resid_ref, mu_ref, out_ref, acc_ref):
    """One (batch-block, query-tile, neighbor-tile) grid step.

    cq_ref    : (Bb, TQ, F)  query-atom coordinates
    ck_ref    : (Bb, TM, F)  neighbor-atom coordinates (current m-chunk)
    xt_ref    : (Bb, F, TM)  W(atom_emb) pre-transposed (neighbors on lanes)
    resid_ref : (Bb, TQ, F)  atom_emb - exp(-GAMMA*mu^2)*x   (residual with the
                             exact self-interaction correction folded in)
    mu_ref    : (F, 1)       RBF centers
    out_ref   : (Bb, TQ, F)
    acc_ref   : (Bb, TQ, F)  f32 accumulator, persistent across the m axis
    """
    m = pl.program_id(2)

    @pl.when(m == 0)
    def _init():
        acc_ref[...] = jnp.zeros_like(acc_ref)

    cq = cq_ref[...].astype(jnp.float32)          # (Bb, TQ, F)
    ck = ck_ref[...].astype(jnp.float32)          # (Bb, TM, F)
    xt = xt_ref[...].astype(jnp.float32)          # (Bb, F,  TM)

    # Pairwise squared distances (query tile x neighbor tile) via the Gram
    # trick on the MXU; HIGHEST precision + clamp handle the cancellation.
    gram = jnp.einsum('bqf,bmf->bqm', cq, ck,
                      preferred_element_type=jnp.float32,
                      precision=lax.Precision.HIGHEST)            # (Bb, TQ, TM)
    r2q = jnp.sum(cq * cq, axis=-1)[:, :, None]                   # (Bb, TQ, 1)
    r2k = jnp.sum(ck * ck, axis=-1)[:, None, :]                   # (Bb, 1, TM)
    d2 = jnp.maximum(r2q + r2k - 2.0 * gram, 0.0)                 # (Bb, TQ, TM)

    # RBF filter chunk, lane-dense in the neighbor axis: (Bb, TQ, F, TM).
    mu = mu_ref[...]                                              # (F, 1)
    diff = d2[:, :, None, :] - mu[None, None, :, :]               # (Bb, TQ, F, TM)
    filt = jnp.exp(-GAMMA * diff * diff)

    # einsum 'qmf,mf->qf' for this chunk with m on lanes: multiply by x^T and
    # lane-reduce, accumulating in the f32 scratch.
    acc_ref[...] += jnp.sum(filt * xt[:, None, :, :], axis=-1)    # (Bb, TQ, F)

    @pl.when(m == pl.num_programs(2) - 1)
    def _finalize():
        out_ref[...] = (resid_ref[...].astype(jnp.float32)
                        + acc_ref[...]).astype(out_ref.dtype)


def _query_tile(n_pad, tm, f):
    """Largest query tile (multiple of 8, or full) keeping the filter chunk in budget."""
    if n_pad * tm * f * 4 <= _FILT_BUDGET_BYTES:
        return n_pad
    for t in (512, 256, 128, 64, 32, 16, 8):
        if n_pad % t == 0 and t * tm * f * 4 <= _FILT_BUDGET_BYTES:
            return t
    return 8 if n_pad % 8 == 0 else n_pad


def _batch_tile(b, tq, tm, f):
    """Largest divisor of B whose per-step filter chunk stays under budget."""
    cap = max(1, _FILT_BUDGET_BYTES // max(1, tq * tm * f * 4))
    bb = max(1, min(b, cap))
    while b % bb:
        bb -= 1
    return bb


def interaction(coordinates, atom_emb, w_weight, w_bias, mu):
    """coordinates, atom_emb: (B, N, F); w_weight: (F, F) (PyTorch Linear weight,
    applied as x @ w.T); w_bias, mu: (F,).  Returns (B, N, F)."""
    B, N, F = atom_emb.shape
    out_dtype = atom_emb.dtype

    # Hoisted Linear: one large XLA matmul (full MXU tile) instead of per-batch
    # slivers inside the kernel.
    x = (atom_emb.astype(jnp.float32) @ w_weight.T.astype(jnp.float32)
         + w_bias.astype(jnp.float32))                            # (B, N, F)

    # Exact self-interaction correction: with the Gram form d2[n,n] == 0, so
    # the masked-out diagonal filter is the constant exp(-GAMMA*mu^2).
    mu_f32 = mu.astype(jnp.float32)
    diag_c = jnp.exp(-GAMMA * mu_f32 * mu_f32)                    # (F,)
    resid = atom_emb.astype(jnp.float32) - diag_c[None, None, :] * x

    # Lane-dense neighbor layout for the kernel.
    xt = jnp.swapaxes(x, 1, 2)                                    # (B, F, N)
    coords = coordinates.astype(jnp.float32)

    # ---- tiling (budget-derived so it also fits v7x's smaller VMEM) --------
    if N <= _LANE:
        n_pad, tm = N, N                    # single neighbor tile, no padding
    else:
        n_pad = ((N + _LANE - 1) // _LANE) * _LANE
        tm = _LANE
    if n_pad != N:
        pad = n_pad - N
        coords = jnp.pad(coords, ((0, 0), (0, pad), (0, 0)))
        resid = jnp.pad(resid, ((0, 0), (0, pad), (0, 0)))
        # zero-padded x  =>  padded neighbors contribute exactly 0
        xt = jnp.pad(xt, ((0, 0), (0, 0), (0, pad)))

    tq = _query_tile(n_pad, tm, F)
    bb = _batch_tile(B, tq, tm, F)
    grid = (B // bb, n_pad // tq, n_pad // tm)

    cost = pl.CostEstimate(
        flops=6 * B * n_pad * n_pad * F,
        transcendentals=B * n_pad * n_pad * F,
        bytes_accessed=4 * (5 * B * n_pad * F + F),
    )

    out = pl.pallas_call(
        _interaction_kernel,
        out_shape=jax.ShapeDtypeStruct((B, n_pad, F), out_dtype),
        grid_spec=pltpu.PrefetchScalarGridSpec(
            num_scalar_prefetch=0,
            grid=grid,
            in_specs=[
                pl.BlockSpec((bb, tq, F), lambda b, q, m: (b, q, 0)),  # query coords
                pl.BlockSpec((bb, tm, F), lambda b, q, m: (b, m, 0)),  # neighbor coords
                pl.BlockSpec((bb, F, tm), lambda b, q, m: (b, 0, m)),  # x^T chunk
                pl.BlockSpec((bb, tq, F), lambda b, q, m: (b, q, 0)),  # residual
                pl.BlockSpec((F, 1), lambda b, q, m: (0, 0)),          # RBF centers
            ],
            out_specs=pl.BlockSpec((bb, tq, F), lambda b, q, m: (b, q, 0)),
            scratch_shapes=[pltpu.VMEM((bb, tq, F), jnp.float32)],
        ),
        compiler_params=pltpu.CompilerParams(
            dimension_semantics=("parallel", "parallel", "arbitrary"),
            vmem_limit_bytes=32 * 1024 * 1024,
        ),
        cost_estimate=cost,
    )(coords, coords, xt, resid, mu_f32.reshape(F, 1))

    return out[:, :N, :]


def interaction_ref(coordinates, atom_emb, w_weight, w_bias, mu):
    """Pure-JAX reference (mirrors the PyTorch forward; elementwise contraction
    so the comparison is not polluted by XLA matmul-precision defaults)."""
    B, N, F = atom_emb.shape
    x = atom_emb @ w_weight.T + w_bias
    d2 = jnp.sum((coordinates[:, :, None, :] - coordinates[:, None, :, :]) ** 2,
                 axis=-1)                                               # (B,N,N)
    Wf = jnp.exp(-GAMMA * (d2[..., None] - mu[None, None, None, :]) ** 2)
    Wf = Wf * (1.0 - jnp.eye(N))[None, :, :, None]
    agg = jnp.sum(Wf * x[:, None, :, :], axis=2)        # == einsum('bnmf,bmf->bnf')
    return atom_emb + agg


if __name__ == "__main__":
    def run_case(B, N, F, key):
        k1, k2, k3, k4 = jax.random.split(key, 4)
        # Scale coordinates so pairwise squared distances overlap the RBF
        # centers (otherwise every filter value is ~0 and the check is trivial).
        coordinates = 0.2 * jax.random.normal(k1, (B, N, F), dtype=jnp.float32)
        atom_emb = jax.random.normal(k2, (B, N, F), dtype=jnp.float32)
        # Deterministic parameter init (nn.Linear(F, F) weight + bias)
        w_weight = (jax.random.uniform(k3, (F, F), dtype=jnp.float32) - 0.5) / jnp.sqrt(F)
        w_bias = (jax.random.uniform(k4, (F,), dtype=jnp.float32) - 0.5) / jnp.sqrt(F)
        # RBF centers for the synthetic conv filter generator
        mu = jnp.linspace(0.0, 4.0, F, dtype=jnp.float32)

        out = jax.block_until_ready(
            interaction(coordinates, atom_emb, w_weight, w_bias, mu))
        ref = interaction_ref(coordinates, atom_emb, w_weight, w_bias, mu)
        assert out.shape == (B, N, F)
        err = float(jnp.max(jnp.abs(out - ref)))
        assert jnp.allclose(out, ref, atol=1e-3, rtol=1e-3), err

    key = jax.random.PRNGKey(0)
    k_small, k_big = jax.random.split(key)
    run_case(2, 8, 32, k_small)    # single-tile, batched-per-step path
    run_case(2, 200, 32, k_big)    # padded N, multi-step neighbor accumulation path
    print("KERNEL_OK")
</pallas_src>

<mosaic_0001>
module attributes {stable_mosaic.version = 11 : i64} {
  func.func @_interaction_kernel(%arg0: i32, %arg1: i32, %arg2: i32, %arg3: memref<2x8x32xf32, #tpu.memory_space<vmem>>, %arg4: memref<2x8x32xf32, #tpu.memory_space<vmem>>, %arg5: memref<2x32x8xf32, #tpu.memory_space<vmem>>, %arg6: memref<2x8x32xf32, #tpu.memory_space<vmem>>, %arg7: memref<32x1xf32, #tpu.memory_space<vmem>>, %arg8: memref<2x8x32xf32, #tpu.memory_space<vmem>>, %arg9: memref<2x8x32xf32, #tpu.memory_space<vmem>>) attributes {dimension_semantics = [#tpu.dimension_semantics<parallel>, #tpu.dimension_semantics<parallel>, #tpu.dimension_semantics<arbitrary>], iteration_bounds = array<i64: 1, 1, 1>, scalar_prefetch = 0 : i64, scratch_operands = 1 : i64, tpu.core_type = #tpu.core_type<tc>, window_params = [{transform_indices = @transform_0, window_bounds = array<i64: 2, 8, 32>}, {transform_indices = @transform_1, window_bounds = array<i64: 2, 8, 32>}, {transform_indices = @transform_2, window_bounds = array<i64: 2, 32, 8>}, {transform_indices = @transform_3, window_bounds = array<i64: 2, 8, 32>}, {pipeline_mode = #tpu.pipeline_mode<synchronous>, transform_indices = @transform_4, window_bounds = array<i64: 32, 1>}, {transform_indices = @transform_5, window_bounds = array<i64: 2, 8, 32>}]} {
    %c0_i32 = arith.constant 0 : i32
    %0 = arith.cmpi eq, %arg2, %c0_i32 : i32
    %1 = arith.extui %0 : i1 to i32
    %c0_i32_0 = arith.constant 0 : i32
    %2 = arith.cmpi ne, %1, %c0_i32_0 : i32
    scf.if %2 {
      %cst_25 = arith.constant 0.000000e+00 : f32
      %41 = vector.broadcast %cst_25 : f32 to vector<2x8x32xf32>
      %c0_26 = arith.constant 0 : index
      %c0_27 = arith.constant 0 : index
      %c0_28 = arith.constant 0 : index
      %42 = vector.load %arg9[%c0_26, %c0_27, %c0_28] : memref<2x8x32xf32, #tpu.memory_space<vmem>>, vector<2x8x32xf32>
      tpu.vector_store %arg9[%c0_26, %c0_27, %c0_28], %41 {strides = array<i32>} : memref<2x8x32xf32, #tpu.memory_space<vmem>>, vector<2x8x32xf32>,
    } else {
    }
    %c0 = arith.constant 0 : index
    %c0_1 = arith.constant 0 : index
    %c0_2 = arith.constant 0 : index
    %3 = vector.load %arg3[%c0, %c0_1, %c0_2] : memref<2x8x32xf32, #tpu.memory_space<vmem>>, vector<2x8x32xf32>
    %c0_3 = arith.constant 0 : index
    %c0_4 = arith.constant 0 : index
    %c0_5 = arith.constant 0 : index
    %4 = vector.load %arg4[%c0_3, %c0_4, %c0_5] : memref<2x8x32xf32, #tpu.memory_space<vmem>>, vector<2x8x32xf32>
    %c0_6 = arith.constant 0 : index
    %c0_7 = arith.constant 0 : index
    %c0_8 = arith.constant 0 : index
    %5 = vector.load %arg5[%c0_6, %c0_7, %c0_8] : memref<2x32x8xf32, #tpu.memory_space<vmem>>, vector<2x32x8xf32>
    "tpu.trace_start"() <{level = 10 : i32, message = "bqf,bmf->bqm"}> : () -> ()
    %cst = arith.constant dense<0.000000e+00> : vector<2x8x8xf32>
    %6 = tpu.matmul %3, %4, %cst {dimension_numbers = #tpu.dot_dimension_numbers<[2], [2], [1], [1], [0, 0, 0, 1, 1, 1], [0], [0]>, precision = #tpu.contract_precision<fp32>} : vector<2x8x32xf32>, vector<2x8x32xf32>, vector<2x8x8xf32> -> vector<2x8x8xf32>
    "tpu.trace_stop"() : () -> ()
    %7 = arith.mulf %3, %3 : vector<2x8x32xf32>
    %cst_9 = arith.constant dense<0.000000e+00> : vector<2x8xf32>
    %8 = vector.multi_reduction <add>, %7, %cst_9 [2] : vector<2x8x32xf32> to vector<2x8xf32>
    %9 = vector.shape_cast %8 : vector<2x8xf32> to vector<2x8x1xf32>
    %10 = arith.mulf %4, %4 : vector<2x8x32xf32>
    %cst_10 = arith.constant dense<0.000000e+00> : vector<2x8xf32>
    %11 = vector.multi_reduction <add>, %10, %cst_10 [2] : vector<2x8x32xf32> to vector<2x8xf32>
    %12 = vector.shape_cast %11 : vector<2x8xf32> to vector<2x1x8xf32>
    %13 = vector.broadcast %9 : vector<2x8x1xf32> to vector<2x8x8xf32>
    %14 = vector.broadcast %12 : vector<2x1x8xf32> to vector<2x8x8xf32>
    %15 = arith.addf %13, %14 : vector<2x8x8xf32>
    %cst_11 = arith.constant 2.000000e+00 : f32
    %16 = vector.broadcast %cst_11 : f32 to vector<2x8x8xf32>
    %17 = arith.mulf %16, %6 : vector<2x8x8xf32>
    %18 = arith.subf %15, %17 : vector<2x8x8xf32>
    %cst_12 = arith.constant 0.000000e+00 : f32
    %19 = vector.broadcast %cst_12 : f32 to vector<2x8x8xf32>
    %20 = arith.maximumf %18, %19 : vector<2x8x8xf32>
    %c0_13 = arith.constant 0 : index
    %c0_14 = arith.constant 0 : index
    %21 = vector.load %arg7[%c0_13, %c0_14] : memref<32x1xf32, #tpu.memory_space<vmem>>, vector<32x1xf32>
    %22 = vector.shape_cast %20 : vector<2x8x8xf32> to vector<2x8x1x8xf32>
    %23 = vector.shape_cast %21 : vector<32x1xf32> to vector<1x1x32x1xf32>
    %24 = vector.broadcast %22 : vector<2x8x1x8xf32> to vector<2x8x32x8xf32>
    %25 = vector.broadcast %23 : vector<1x1x32x1xf32> to vector<2x8x32x8xf32>
    %26 = arith.subf %24, %25 : vector<2x8x32x8xf32>
    %cst_15 = arith.constant -1.000000e+01 : f32
    %27 = vector.broadcast %cst_15 : f32 to vector<2x8x32x8xf32>
    %28 = arith.mulf %27, %26 : vector<2x8x32x8xf32>
    %29 = arith.mulf %28, %26 : vector<2x8x32x8xf32>
    %30 = math.exp %29 : vector<2x8x32x8xf32>
    %c0_16 = arith.constant 0 : index
    %c0_17 = arith.constant 0 : index
    %c0_18 = arith.constant 0 : index
    %31 = vector.load %arg9[%c0_16, %c0_17, %c0_18] : memref<2x8x32xf32, #tpu.memory_space<vmem>>, vector<2x8x32xf32>
    %32 = vector.shape_cast %5 : vector<2x32x8xf32> to vector<2x1x32x8xf32>
    %33 = vector.broadcast %32 : vector<2x1x32x8xf32> to vector<2x8x32x8xf32>
    %34 = arith.mulf %30, %33 : vector<2x8x32x8xf32>
    %cst_19 = arith.constant dense<0.000000e+00> : vector<2x8x32xf32>
    %35 = vector.multi_reduction <add>, %34, %cst_19 [3] : vector<2x8x32x8xf32> to vector<2x8x32xf32>
    %36 = arith.addf %31, %35 : vector<2x8x32xf32>
    %c0_20 = arith.constant 0 : index
    %c0_21 = arith.constant 0 : index
    %c0_22 = arith.constant 0 : index
    %37 = vector.load %arg9[%c0_20, %c0_21, %c0_22] : memref<2x8x32xf32, #tpu.memory_space<vmem>>, vector<2x8x32xf32>
    tpu.vector_store %arg9[%c0_20, %c0_21, %c0_22], %36 {strides = array<i32>} : memref<2x8x32xf32, #tpu.memory_space<vmem>>, vector<2x8x32xf32>,
    %c0_i32_23 = arith.constant 0 : i32
    %38 = arith.cmpi eq, %arg2, %c0_i32_23 : i32
    %39 = arith.extui %38 : i1 to i32
    %c0_i32_24 = arith.constant 0 : i32
    %40 = arith.cmpi ne, %39, %c0_i32_24 : i32
    scf.if %40 {
      %c0_25 = arith.constant 0 : index
      %c0_26 = arith.constant 0 : index
      %c0_27 = arith.constant 0 : index
      %41 = vector.load %arg6[%c0_25, %c0_26, %c0_27] : memref<2x8x32xf32, #tpu.memory_space<vmem>>, vector<2x8x32xf32>
      %c0_28 = arith.constant 0 : index
      %c0_29 = arith.constant 0 : index
      %c0_30 = arith.constant 0 : index
      %42 = vector.load %arg9[%c0_28, %c0_29, %c0_30] : memref<2x8x32xf32, #tpu.memory_space<vmem>>, vector<2x8x32xf32>
      %43 = arith.addf %41, %42 : vector<2x8x32xf32>
      %c0_31 = arith.constant 0 : index
      %c0_32 = arith.constant 0 : index
      %c0_33 = arith.constant 0 : index
      %44 = vector.load %arg8[%c0_31, %c0_32, %c0_33] : memref<2x8x32xf32, #tpu.memory_space<vmem>>, vector<2x8x32xf32>
      tpu.vector_store %arg8[%c0_31, %c0_32, %c0_33], %43 {strides = array<i32>} : memref<2x8x32xf32, #tpu.memory_space<vmem>>, vector<2x8x32xf32>,
    } else {
    }
    return
  }
  func.func @transform_0(%arg0: i32, %arg1: i32, %arg2: i32) -> (i32, i32, i32) {
    %c0_i32 = arith.constant 0 : i32
    %c0_i32_0 = arith.constant 0 : i32
    return %arg0, %arg1, %c0_i32 : i32, i32, i32
  }
  func.func @transform_1(%arg0: i32, %arg1: i32, %arg2: i32) -> (i32, i32, i32) {
    %c0_i32 = arith.constant 0 : i32
    %c0_i32_0 = arith.constant 0 : i32
    return %arg0, %arg2, %c0_i32 : i32, i32, i32
  }
  func.func @transform_2(%arg0: i32, %arg1: i32, %arg2: i32) -> (i32, i32, i32) {
    %c0_i32 = arith.constant 0 : i32
    %c0_i32_0 = arith.constant 0 : i32
    return %arg0, %c0_i32, %arg2 : i32, i32, i32
  }
  func.func @transform_3(%arg0: i32, %arg1: i32, %arg2: i32) -> (i32, i32, i32) {
    %c0_i32 = arith.constant 0 : i32
    %c0_i32_0 = arith.constant 0 : i32
    return %arg0, %arg1, %c0_i32 : i32, i32, i32
  }
  func.func @transform_4(%arg0: i32, %arg1: i32, %arg2: i32) -> (i32, i32) {
    %c0_i32 = arith.constant 0 : i32
    %c0_i32_0 = arith.constant 0 : i32
    %c0_i32_1 = arith.constant 0 : i32
    return %c0_i32, %c0_i32_0 : i32, i32
  }
  func.func @transform_5(%arg0: i32, %arg1: i32, %arg2: i32) -> (i32, i32, i32) {
    %c0_i32 = arith.constant 0 : i32
    %c0_i32_0 = arith.constant 0 : i32
    return %arg0, %arg1, %c0_i32 : i32, i32, i32
  }
}

</mosaic_0001>

<llo_original>
// kernel: tpu_custom_call.1
$region0: #{tpu_custom_call.1}
  #allocation0 [shape = 'u32[]', space=smem, size = 0x4, offset = 0x4, fixed_abs, tag = 'smem constant byte address 0x4 - core index']
  #allocation1 [shape = 'u32[144,128]{1,0:T(1,128)}', space=vmem, size = 0x12000, scoped, tag = 'internal scratch']
  #allocation2 [shape = 'f32[2,8,32]{2,1,0:T(8,128)}', space=vmem, size = 0x2000, scoped, tag = 'scratch operand']
  %s0 = inlined_call_operand.vmem [shape: f32[2,8,32], index: 0, kind: input, shape index: {}]
  %s1 = inlined_call_operand.vmem [shape: f32[2,8,32], index: 1, kind: input, shape index: {}]
  %s2 = inlined_call_operand.vmem [shape: f32[2,32,8], index: 2, kind: input, shape index: {}]
  %s3 = inlined_call_operand.vmem [shape: f32[2,8,32], index: 3, kind: input, shape index: {}]
  %s4 = inlined_call_operand.vmem [shape: f32[32,1], index: 4, kind: input, shape index: {}]
  %s5 = inlined_call_operand.hbm [shape: f32[2,8,32], index: 5, kind: output, shape index: {}]
  %s6 = sld [smem:[#allocation0]]
  $region38: #{tpu_custom_call.1} parent=0
    _
  %s8 = ssub.s32 1, %s6
  %s9 = scalar_select 0, %s8, %s6
  $region1: #{tpu_custom_call.1} parent=0
    #allocation3 [shape = 'u8[8192]{0}', space=vmem, size = 0x2000, scoped, tag = 'output window, operand 0, single buffered']
    #allocation4 [shape = 's32[1]{0}', space=sflag, size = 0x4, scoped, tag = 'scoped memory for tpu_custom_call.1']
    %10 = vsyncpa [#allocation4], 0
    // Predicated region
    $region2: #{tpu_custom_call.1} parent=1 // pred_check
      _
    $region3: #{tpu_custom_call.1} parent=1 // pred_check_branch
      %12 = sbr.rel (0) target = $region5
    $region4: #{tpu_custom_call.1} parent=1 // pred_region
      _
    $region5: #{tpu_custom_call.1} parent=1 // pred_fallthru
      _
    // Predicated region
    $region6: #{tpu_custom_call.1} parent=1 // pred_check
      _
    $region7: #{tpu_custom_call.1} parent=1 // pred_check_branch
      %14 = sbr.rel (0) target = $region9
    $region8: #{tpu_custom_call.1} parent=1 // pred_region
      _
    $region9: #{tpu_custom_call.1} parent=1 // pred_fallthru
      _
    // Predicated region
    $region10: #{tpu_custom_call.1} parent=1 // pred_check
      _
    $region11: #{tpu_custom_call.1} parent=1 // pred_check_branch
      %16 = sbr.rel (0) target = $region13
    $region12: #{tpu_custom_call.1} parent=1 // pred_region
      _
    $region13: #{tpu_custom_call.1} parent=1 // pred_fallthru
      _
    // Predicated region
    $region14: #{tpu_custom_call.1} parent=1 // pred_check
      _
    $region15: #{tpu_custom_call.1} parent=1 // pred_check_branch
      %18 = sbr.rel (0) target = $region17
    $region16: #{tpu_custom_call.1} parent=1 // pred_region
      _
    $region17: #{tpu_custom_call.1} parent=1 // pred_fallthru
      _
    // Predicated region
    $region18: #{tpu_custom_call.1} parent=1 // pred_check
      _
    $region19: #{tpu_custom_call.1} parent=1 // pred_check_branch
      %20 = sbr.rel (0) target = $region21
    $region20: #{tpu_custom_call.1} parent=1 // pred_region
      _
    $region21: #{tpu_custom_call.1} parent=1 // pred_fallthru
      _
    %p21 = scmp.eq.s32.totalorder 0, 0
    // Predicated region
    $region22: #{tpu_custom_call.1} parent=1 // pred_check
      %p22 = pneg %p21
    $region23: #{tpu_custom_call.1} parent=1 // pred_check_branch
      %24 = sbr.rel (%p22) target = $region25
    $region24: #{tpu_custom_call.1} parent=1 // pred_region
      %vm25 = vcmask 261120
      %26 = vst.msk [vmem:[#allocation2] sm:$0xff] %vm25, 0.0
      %27 = vst.msk [vmem:[#allocation2 + $0x8] sm:$0xff] %vm25, 0.0
    $region25: #{tpu_custom_call.1} parent=1 // pred_fallthru
      _
    %v28 = vld [vmem:[%s0] sm:$0xff]
    %v29 = vld [vmem:[%s0 + $0x8] sm:$0xff]
    %v30 = vld [vmem:[%s1] sm:$0xff]
    %v31 = vld [vmem:[%s1 + $0x8] sm:$0xff]
    %v32 = vld [vmem:[%s2] sm:$0xff]
    %v33 = vld [vmem:[%s2 + $0x8] sm:$0xff]
    %v34 = vld [vmem:[%s2 + $0x10] sm:$0xff]
    %v35 = vld [vmem:[%s2 + $0x18] sm:$0xff]
    %v36 = vld [vmem:[%s2 + $0x20] sm:$0xff]
    %v37 = vld [vmem:[%s2 + $0x28] sm:$0xff]
    %v38 = vld [vmem:[%s2 + $0x30] sm:$0xff]
    %v39 = vld [vmem:[%s2 + $0x38] sm:$0xff]
    %vm40 = vcmask 261120
    %v42 = vsel %vm40, %v28, 0
    %v45 = vsel %vm40, %v30, 0
    %47 = vmatprep.subr.mxu0 0.0
    %v48 = vand.u32 %v45, 4294901760
    %49 = vmatpush1.xpose.msra.mxu0 %v48
    %50 = vmatprep.subr.mxu0 0.0
    %51 = vmatpush1.xpose.msra.mxu0 0.0
    %52 = vmatprep.subr.mxu0 0.0
    %53 = vmatpush1.xpose.msra.mxu0 0.0
    %54 = vmatprep.subr.mxu0 0.0
    %55 = vmatpush1.xpose.msra.mxu0 0.0
    %56 = vmatprep.subr.mxu0 0.0
    %57 = vmatpush1.xpose.msra.mxu0 0.0
    %58 = vmatprep.subr.mxu0 0.0
    %59 = vmatpush1.xpose.msra.mxu0 0.0
    %60 = vmatprep.subr.mxu0 0.0
    %61 = vmatpush1.xpose.msra.mxu0 0.0
    %62 = vmatprep.subr.mxu0 0.0
    %63 = vmatpush1.xpose.msra.mxu0 0.0
    %64 = vmatprep.subr.mxu0 0.0
    %65 = vmatpush1.xpose.msra.mxu0 0.0
    %66 = vmatprep.subr.mxu0 0.0
    %67 = vmatpush1.xpose.msra.mxu0 0.0
    %68 = vmatprep.subr.mxu0 0.0
    %69 = vmatpush1.xpose.msra.mxu0 0.0
    %70 = vmatprep.subr.mxu0 0.0
    %71 = vmatpush1.xpose.msra.mxu0 0.0
    %72 = vmatprep.subr.mxu0 0.0
    %73 = vmatpush1.xpose.msra.mxu0 0.0
    %74 = vmatprep.subr.mxu0 0.0
    %75 = vmatpush1.xpose.msra.mxu0 0.0
    %76 = vmatprep.subr.mxu0 0.0
    %77 = vmatpush1.xpose.msra.mxu0 0.0
    %78 = vmatprep.subr.mxu0 0.0
    %79 = vmatpush1.xpose.msra.mxu0 0.0
    %80 = vmatprep.subr.mxu0 0.0
    %81 = vmatpush1.xpose.msra.mxu0 0.0
    %82 = vmatprep.subr.mxu0 0.0
    %83 = vmatpush1.xpose.msra.mxu0 0.0
    %84 = vmatprep.subr.mxu0 0.0
    %85 = vmatpush1.xpose.msra.mxu0 0.0
    %86 = vmatprep.subr.mxu0 0.0
    %87 = vmatpush1.xpose.msra.mxu0 0.0
    %88 = vmatprep.subr.mxu0 0.0
    %89 = vmatpush1.xpose.msra.mxu0 0.0
    %90 = vmatprep.subr.mxu0 0.0
    %91 = vmatpush1.xpose.msra.mxu0 0.0
    %92 = vmatprep.subr.mxu0 0.0
    %93 = vmatpush1.xpose.msra.mxu0 0.0
    %94 = vmatprep.subr.mxu0 0.0
    %95 = vmatpush1.xpose.msra.mxu0 0.0
    %96 = vmatprep.subr.mxu0 0.0
    %97 = vmatpush1.xpose.msra.mxu0 0.0
    %98 = vmatprep.subr.mxu0 0.0
    %99 = vmatpush1.xpose.msra.mxu0 0.0
    %100 = vmatprep.subr.mxu0 0.0
    %101 = vmatpush1.xpose.msra.mxu0 0.0
    %102 = vmatprep.subr.mxu0 0.0
    %103 = vmatpush1.xpose.msra.mxu0 0.0
    %104 = vmatprep.subr.mxu0 0.0
    %105 = vmatpush1.xpose.msra.mxu0 0.0
    %106 = vmatprep.subr.mxu0 0.0
    %107 = vmatpush1.xpose.msra.mxu0 0.0
    %108 = vmatprep.subr.mxu0 0.0
    %109 = vmatpush1.xpose.msra.mxu0 0.0
    %110 = vmatprep.subr.mxu0 0.0
    %111 = vmatpush1.xpose.msra.mxu0 0.0
    %112 = vmatprep.mubr.f32.mxu0 0.0
    %v113 = vand.u32 %v42, 4294901760
    %v114 = vsub.f32 %v42, %v113
    %v115 = vand.u32 %v114, 4294901760
    %v116 = vsub.f32 %v114, %v115
    %v117 = vand.u32 %v116, 4294901760
    %118 = vmatmul.mubr.f32.gmra.mrb[0].mxu0 %v117
    %v119 = vpop.f32.mrb[0].mxu0
    %v120 = vadd.f32 0.0, %v119
    %v121 = vpop.f32.mrb[0].mxu0
    %122 = vdwg.mxu0
    %123 = vmatprep.subr.mxu0 0.0
    %v124 = vand.u32 %v45, 4294901760
    %v125 = vsub.f32 %v45, %v124
    %v126 = vand.u32 %v125, 4294901760
    %v127 = vsub.f32 %v125, %v126
    %v128 = vand.u32 %v127, 4294901760
    %129 = vmatpush1.xpose.msra.mxu0 %v128
    %130 = vmatprep.subr.mxu0 0.0
    %131 = vmatpush1.xpose.msra.mxu0 0.0
    %132 = vmatprep.subr.mxu0 0.0
    %133 = vmatpush1.xpose.msra.mxu0 0.0
    %134 = vmatprep.subr.mxu0 0.0
    %135 = vmatpush1.xpose.msra.mxu0 0.0
    %136 = vmatprep.subr.mxu0 0.0
    %137 = vmatpush1.xpose.msra.mxu0 0.0
    %138 = vmatprep.subr.mxu0 0.0
    %139 = vmatpush1.xpose.msra.mxu0 0.0
    %140 = vmatprep.subr.mxu0 0.0
    %141 = vmatpush1.xpose.msra.mxu0 0.0
    %142 = vmatprep.subr.mxu0 0.0
    %143 = vmatpush1.xpose.msra.mxu0 0.0
    %144 = vmatprep.subr.mxu0 0.0
    %145 = vmatpush1.xpose.msra.mxu0 0.0
    %146 = vmatprep.subr.mxu0 0.0
    %147 = vmatpush1.xpose.msra.mxu0 0.0
    %148 = vmatprep.subr.mxu0 0.0
    %149 = vmatpush1.xpose.msra.mxu0 0.0
    %150 = vmatprep.subr.mxu0 0.0
    %151 = vmatpush1.xpose.msra.mxu0 0.0
    %152 = vmatprep.subr.mxu0 0.0
    %153 = vmatpush1.xpose.msra.mxu0 0.0
    %154 = vmatprep.subr.mxu0 0.0
    %155 = vmatpush1.xpose.msra.mxu0 0.0
    %156 = vmatprep.subr.mxu0 0.0
    %157 = vmatpush1.xpose.msra.mxu0 0.0
    %158 = vmatprep.subr.mxu0 0.0
    %159 = vmatpush1.xpose.msra.mxu0 0.0
    %160 = vmatprep.subr.mxu0 0.0
    %161 = vmatpush1.xpose.msra.mxu0 0.0
    %162 = vmatprep.subr.mxu0 0.0
    %163 = vmatpush1.xpose.msra.mxu0 0.0
    %164 = vmatprep.subr.mxu0 0.0
    %165 = vmatpush1.xpose.msra.mxu0 0.0
    %166 = vmatprep.subr.mxu0 0.0
    %167 = vmatpush1.xpose.msra.mxu0 0.0
    %168 = vmatprep.subr.mxu0 0.0
    %169 = vmatpush1.xpose.msra.mxu0 0.0
    %170 = vmatprep.subr.mxu0 0.0
    %171 = vmatpush1.xpose.msra.mxu0 0.0
    %172 = vmatprep.subr.mxu0 0.0
    %173 = vmatpush1.xpose.msra.mxu0 0.0
    %174 = vmatprep.subr.mxu0 0.0
    %175 = vmatpush1.xpose.msra.mxu0 0.0
    %176 = vmatprep.subr.mxu0 0.0
    %177 = vmatpush1.xpose.msra.mxu0 0.0
    %178 = vmatprep.subr.mxu0 0.0
    %179 = vmatpush1.xpose.msra.mxu0 0.0
    %180 = vmatprep.subr.mxu0 0.0
    %181 = vmatpush1.xpose.msra.mxu0 0.0
    %182 = vmatprep.subr.mxu0 0.0
    %183 = vmatpush1.xpose.msra.mxu0 0.0
    %184 = vmatprep.subr.mxu0 0.0
    %185 = vmatpush1.xpose.msra.mxu0 0.0
    %186 = vmatprep.subr.mxu0 0.0
    %187 = vmatpush1.xpose.msra.mxu0 0.0
    %188 = vmatprep.subr.mxu0 0.0
    %189 = vmatpush1.xpose.msra.mxu0 0.0
    %190 = vmatprep.subr.mxu0 0.0
    %191 = vmatpush1.xpose.msra.mxu0 0.0
    %192 = vmatprep.mubr.f32.mxu0 0.0
    %v193 = vand.u32 %v42, 4294901760
    %194 = vmatmul.mubr.f32.gmra.mrb[0].mxu0 %v193
    %v195 = vpop.f32.mrb[0].mxu0
    %v196 = vadd.f32 %v120, %v195
    %v197 = vpop.f32.mrb[0].mxu0
    %198 = vdwg.mxu0
    %199 = vmatprep.subr.mxu0 0.0
    %v200 = vand.u32 %v45, 4294901760
    %v201 = vsub.f32 %v45, %v200
    %202 = vmatpush1.xpose.msra.mxu0 %v201
    %203 = vmatprep.subr.mxu0 0.0
    %204 = vmatpush1.xpose.msra.mxu0 0.0
    %205 = vmatprep.subr.mxu0 0.0
    %206 = vmatpush1.xpose.msra.mxu0 0.0
    %207 = vmatprep.subr.mxu0 0.0
    %208 = vmatpush1.xpose.msra.mxu0 0.0
    %209 = vmatprep.subr.mxu0 0.0
    %210 = vmatpush1.xpose.msra.mxu0 0.0
    %211 = vmatprep.subr.mxu0 0.0
    %212 = vmatpush1.xpose.msra.mxu0 0.0
    %213 = vmatprep.subr.mxu0 0.0
    %214 = vmatpush1.xpose.msra.mxu0 0.0
    %215 = vmatprep.subr.mxu0 0.0
    %216 = vmatpush1.xpose.msra.mxu0 0.0
    %217 = vmatprep.subr.mxu0 0.0
    %218 = vmatpush1.xpose.msra.mxu0 0.0
    %219 = vmatprep.subr.mxu0 0.0
    %220 = vmatpush1.xpose.msra.mxu0 0.0
    %221 = vmatprep.subr.mxu0 0.0
    %222 = vmatpush1.xpose.msra.mxu0 0.0
    %223 = vmatprep.subr.mxu0 0.0
    %224 = vmatpush1.xpose.msra.mxu0 0.0
    %225 = vmatprep.subr.mxu0 0.0
    %226 = vmatpush1.xpose.msra.mxu0 0.0
    %227 = vmatprep.subr.mxu0 0.0
    %228 = vmatpush1.xpose.msra.mxu0 0.0
    %229 = vmatprep.subr.mxu0 0.0
    %230 = vmatpush1.xpose.msra.mxu0 0.0
    %231 = vmatprep.subr.mxu0 0.0
    %232 = vmatpush1.xpose.msra.mxu0 0.0
    %233 = vmatprep.subr.mxu0 0.0
    %234 = vmatpush1.xpose.msra.mxu0 0.0
    %235 = vmatprep.subr.mxu0 0.0
    %236 = vmatpush1.xpose.msra.mxu0 0.0
    %237 = vmatprep.subr.mxu0 0.0
    %238 = vmatpush1.xpose.msra.mxu0 0.0
    %239 = vmatprep.subr.mxu0 0.0
    %240 = vmatpush1.xpose.msra.mxu0 0.0
    %241 = vmatprep.subr.mxu0 0.0
    %242 = vmatpush1.xpose.msra.mxu0 0.0
    %243 = vmatprep.subr.mxu0 0.0
    %244 = vmatpush1.xpose.msra.mxu0 0.0
    %245 = vmatprep.subr.mxu0 0.0
    %246 = vmatpush1.xpose.msra.mxu0 0.0
    %247 = vmatprep.subr.mxu0 0.0
    %248 = vmatpush1.xpose.msra.mxu0 0.0
    %249 = vmatprep.subr.mxu0 0.0
    %250 = vmatpush1.xpose.msra.mxu0 0.0
    %251 = vmatprep.subr.mxu0 0.0
    %252 = vmatpush1.xpose.msra.mxu0 0.0
    %253 = vmatprep.subr.mxu0 0.0
    %254 = vmatpush1.xpose.msra.mxu0 0.0
    %255 = vmatprep.subr.mxu0 0.0
    %256 = vmatpush1.xpose.msra.mxu0 0.0
    %257 = vmatprep.subr.mxu0 0.0
    %258 = vmatpush1.xpose.msra.mxu0 0.0
    %259 = vmatprep.subr.mxu0 0.0
    %260 = vmatpush1.xpose.msra.mxu0 0.0
    %261 = vmatprep.subr.mxu0 0.0
    %262 = vmatpush1.xpose.msra.mxu0 0.0
    %263 = vmatprep.subr.mxu0 0.0
    %264 = vmatpush1.xpose.msra.mxu0 0.0
    %265 = vmatprep.mubr.f32.mxu0 0.0
    %v266 = vand.u32 %v42, 4294901760
    %v267 = vsub.f32 %v42, %v266
    %268 = vmatmul.mubr.f32.gmra.mrb[0].mxu0 %v267
    %v269 = vpop.f32.mrb[0].mxu0
    %v270 = vadd.f32 %v196, %v269
    %v271 = vpop.f32.mrb[0].mxu0
    %272 = vdwg.mxu0
    %273 = vmatprep.subr.mxu0 0.0
    %v274 = vand.u32 %v45, 4294901760
    %275 = vmatpush1.xpose.msra.mxu0 %v274
    %276 = vmatprep.subr.mxu0 0.0
    %277 = vmatpush1.xpose.msra.mxu0 0.0
    %278 = vmatprep.subr.mxu0 0.0
    %279 = vmatpush1.xpose.msra.mxu0 0.0
    %280 = vmatprep.subr.mxu0 0.0
    %281 = vmatpush1.xpose.msra.mxu0 0.0
    %282 = vmatprep.subr.mxu0 0.0
    %283 = vmatpush1.xpose.msra.mxu0 0.0
    %284 = vmatprep.subr.mxu0 0.0
    %285 = vmatpush1.xpose.msra.mxu0 0.0
    %286 = vmatprep.subr.mxu0 0.0
    %287 = vmatpush1.xpose.msra.mxu0 0.0
    %288 = vmatprep.subr.mxu0 0.0
    %289 = vmatpush1.xpose.msra.mxu0 0.0
    %290 = vmatprep.subr.mxu0 0.0
    %291 = vmatpush1.xpose.msra.mxu0 0.0
    %292 = vmatprep.subr.mxu0 0.0
    %293 = vmatpush1.xpose.msra.mxu0 0.0
    %294 = vmatprep.subr.mxu0 0.0
    %295 = vmatpush1.xpose.msra.mxu0 0.0
    %296 = vmatprep.subr.mxu0 0.0
    %297 = vmatpush1.xpose.msra.mxu0 0.0
    %298 = vmatprep.subr.mxu0 0.0
    %299 = vmatpush1.xpose.msra.mxu0 0.0
    %300 = vmatprep.subr.mxu0 0.0
    %301 = vmatpush1.xpose.msra.mxu0 0.0
    %302 = vmatprep.subr.mxu0 0.0
    %303 = vmatpush1.xpose.msra.mxu0 0.0
    %304 = vmatprep.subr.mxu0 0.0
    %305 = vmatpush1.xpose.msra.mxu0 0.0
    %306 = vmatprep.subr.mxu0 0.0
    %307 = vmatpush1.xpose.msra.mxu0 0.0
    %308 = vmatprep.subr.mxu0 0.0
    %309 = vmatpush1.xpose.msra.mxu0 0.0
    %310 = vmatprep.subr.mxu0 0.0
    %311 = vmatpush1.xpose.msra.mxu0 0.0
    %312 = vmatprep.subr.mxu0 0.0
    %313 = vmatpush1.xpose.msra.mxu0 0.0
    %314 = vmatprep.subr.mxu0 0.0
    %315 = vmatpush1.xpose.msra.mxu0 0.0
    %316 = vmatprep.subr.mxu0 0.0
    %317 = vmatpush1.xpose.msra.mxu0 0.0
    %318 = vmatprep.subr.mxu0 0.0
    %319 = vmatpush1.xpose.msra.mxu0 0.0
    %320 = vmatprep.subr.mxu0 0.0
    %321 = vmatpush1.xpose.msra.mxu0 0.0
    %322 = vmatprep.subr.mxu0 0.0
    %323 = vmatpush1.xpose.msra.mxu0 0.0
    %324 = vmatprep.subr.mxu0 0.0
    %325 = vmatpush1.xpose.msra.mxu0 0.0
    %326 = vmatprep.subr.mxu0 0.0
    %327 = vmatpush1.xpose.msra.mxu0 0.0
    %328 = vmatprep.subr.mxu0 0.0
    %329 = vmatpush1.xpose.msra.mxu0 0.0
    %330 = vmatprep.subr.mxu0 0.0
    %331 = vmatpush1.xpose.msra.mxu0 0.0
    %332 = vmatprep.subr.mxu0 0.0
    %333 = vmatpush1.xpose.msra.mxu0 0.0
    %334 = vmatprep.subr.mxu0 0.0
    %335 = vmatpush1.xpose.msra.mxu0 0.0
    %336 = vmatprep.subr.mxu0 0.0
    %337 = vmatpush1.xpose.msra.mxu0 0.0
    %338 = vmatprep.mubr.f32.mxu0 0.0
    %v339 = vand.u32 %v42, 4294901760
    %v340 = vsub.f32 %v42, %v339
    %v341 = vand.u32 %v340, 4294901760
    %342 = vmatmul.mubr.f32.gmra.mrb[0].mxu0 %v341
    %v343 = vpop.f32.mrb[0].mxu0
    %v344 = vadd.f32 %v270, %v343
    %v345 = vpop.f32.mrb[0].mxu0
    %346 = vdwg.mxu0
    %347 = vmatprep.subr.mxu0 0.0
    %v348 = vand.u32 %v45, 4294901760
    %v349 = vsub.f32 %v45, %v348
    %v350 = vand.u32 %v349, 4294901760
    %351 = vmatpush1.xpose.msra.mxu0 %v350
    %352 = vmatprep.subr.mxu0 0.0
    %353 = vmatpush1.xpose.msra.mxu0 0.0
    %354 = vmatprep.subr.mxu0 0.0
    %355 = vmatpush1.xpose.msra.mxu0 0.0
    %356 = vmatprep.subr.mxu0 0.0
    %357 = vmatpush1.xpose.msra.mxu0 0.0
    %358 = vmatprep.subr.mxu0 0.0
    %359 = vmatpush1.xpose.msra.mxu0 0.0
    %360 = vmatprep.subr.mxu0 0.0
    %361 = vmatpush1.xpose.msra.mxu0 0.0
    %362 = vmatprep.subr.mxu0 0.0
    %363 = vmatpush1.xpose.msra.mxu0 0.0
    %364 = vmatprep.subr.mxu0 0.0
    %365 = vmatpush1.xpose.msra.mxu0 0.0
    %366 = vmatprep.subr.mxu0 0.0
    %367 = vmatpush1.xpose.msra.mxu0 0.0
    %368 = vmatprep.subr.mxu0 0.0
    %369 = vmatpush1.xpose.msra.mxu0 0.0
    %370 = vmatprep.subr.mxu0 0.0
    %371 = vmatpush1.xpose.msra.mxu0 0.0
    %372 = vmatprep.subr.mxu0 0.0
    %373 = vmatpush1.xpose.msra.mxu0 0.0
    %374 = vmatprep.subr.mxu0 0.0
    %375 = vmatpush1.xpose.msra.mxu0 0.0
    %376 = vmatprep.subr.mxu0 0.0
    %377 = vmatpush1.xpose.msra.mxu0 0.0
    %378 = vmatprep.subr.mxu0 0.0
    %379 = vmatpush1.xpose.msra.mxu0 0.0
    %380 = vmatprep.subr.mxu0 0.0
    %381 = vmatpush1.xpose.msra.mxu0 0.0
    %382 = vmatprep.subr.mxu0 0.0
    %383 = vmatpush1.xpose.msra.mxu0 0.0
    %384 = vmatprep.subr.mxu0 0.0
    %385 = vmatpush1.xpose.msra.mxu0 0.0
    %386 = vmatprep.subr.mxu0 0.0
    %387 = vmatpush1.xpose.msra.mxu0 0.0
    %388 = vmatprep.subr.mxu0 0.0
    %389 = vmatpush1.xpose.msra.mxu0 0.0
    %390 = vmatprep.subr.mxu0 0.0
    %391 = vmatpush1.xpose.msra.mxu0 0.0
    %392 = vmatprep.subr.mxu0 0.0
    %393 = vmatpush1.xpose.msra.mxu0 0.0
    %394 = vmatprep.subr.mxu0 0.0
    %395 = vmatpush1.xpose.msra.mxu0 0.0
    %396 = vmatprep.subr.mxu0 0.0
    %397 = vmatpush1.xpose.msra.mxu0 0.0
    %398 = vmatprep.subr.mxu0 0.0
    %399 = vmatpush1.xpose.msra.mxu0 0.0
    %400 = vmatprep.subr.mxu0 0.0
    %401 = vmatpush1.xpose.msra.mxu0 0.0
    %402 = vmatprep.subr.mxu0 0.0
    %403 = vmatpush1.xpose.msra.mxu0 0.0
    %404 = vmatprep.subr.mxu0 0.0
    %405 = vmatpush1.xpose.msra.mxu0 0.0
    %406 = vmatprep.subr.mxu0 0.0
    %407 = vmatpush1.xpose.msra.mxu0 0.0
    %408 = vmatprep.subr.mxu0 0.0
    %409 = vmatpush1.xpose.msra.mxu0 0.0
    %410 = vmatprep.subr.mxu0 0.0
    %411 = vmatpush1.xpose.msra.mxu0 0.0
    %412 = vmatprep.subr.mxu0 0.0
    %413 = vmatpush1.xpose.msra.mxu0 0.0
    %414 = vmatprep.mubr.f32.mxu0 0.0
    %v415 = vand.u32 %v42, 4294901760
    %416 = vmatmul.mubr.f32.gmra.mrb[0].mxu0 %v415
    %v417 = vpop.f32.mrb[0].mxu0
    %v418 = vadd.f32 %v344, %v417
    %v419 = vpop.f32.mrb[0].mxu0
    %420 = vdwg.mxu0
    %421 = vmatprep.subr.mxu0 0.0
    %v422 = vand.u32 %v45, 4294901760
    %423 = vmatpush1.xpose.msra.mxu0 %v422
    %424 = vmatprep.subr.mxu0 0.0
    %425 = vmatpush1.xpose.msra.mxu0 0.0
    %426 = vmatprep.subr.mxu0 0.0
    %427 = vmatpush1.xpose.msra.mxu0 0.0
    %428 = vmatprep.subr.mxu0 0.0
    %429 = vmatpush1.xpose.msra.mxu0 0.0
    %430 = vmatprep.subr.mxu0 0.0
    %431 = vmatpush1.xpose.msra.mxu0 0.0
    %432 = vmatprep.subr.mxu0 0.0
    %433 = vmatpush1.xpose.msra.mxu0 0.0
    %434 = vmatprep.subr.mxu0 0.0
    %435 = vmatpush1.xpose.msra.mxu0 0.0
    %436 = vmatprep.subr.mxu0 0.0
    %437 = vmatpush1.xpose.msra.mxu0 0.0
    %438 = vmatprep.subr.mxu0 0.0
    %439 = vmatpush1.xpose.msra.mxu0 0.0
    %440 = vmatprep.subr.mxu0 0.0
    %441 = vmatpush1.xpose.msra.mxu0 0.0
    %442 = vmatprep.subr.mxu0 0.0
    %443 = vmatpush1.xpose.msra.mxu0 0.0
    %444 = vmatprep.subr.mxu0 0.0
    %445 = vmatpush1.xpose.msra.mxu0 0.0
    %446 = vmatprep.subr.mxu0 0.0
    %447 = vmatpush1.xpose.msra.mxu0 0.0
    %448 = vmatprep.subr.mxu0 0.0
    %449 = vmatpush1.xpose.msra.mxu0 0.0
    %450 = vmatprep.subr.mxu0 0.0
    %451 = vmatpush1.xpose.msra.mxu0 0.0
    %452 = vmatprep.subr.mxu0 0.0
    %453 = vmatpush1.xpose.msra.mxu0 0.0
    %454 = vmatprep.subr.mxu0 0.0
    %455 = vmatpush1.xpose.msra.mxu0 0.0
    %456 = vmatprep.subr.mxu0 0.0
    %457 = vmatpush1.xpose.msra.mxu0 0.0
    %458 = vmatprep.subr.mxu0 0.0
    %459 = vmatpush1.xpose.msra.mxu0 0.0
    %460 = vmatprep.subr.mxu0 0.0
    %461 = vmatpush1.xpose.msra.mxu0 0.0
    %462 = vmatprep.subr.mxu0 0.0
    %463 = vmatpush1.xpose.msra.mxu0 0.0
    %464 = vmatprep.subr.mxu0 0.0
    %465 = vmatpush1.xpose.msra.mxu0 0.0
    %466 = vmatprep.subr.mxu0 0.0
    %467 = vmatpush1.xpose.msra.mxu0 0.0
    %468 = vmatprep.subr.mxu0 0.0
    %469 = vmatpush1.xpose.msra.mxu0 0.0
    %470 = vmatprep.subr.mxu0 0.0
    %471 = vmatpush1.xpose.msra.mxu0 0.0
    %472 = vmatprep.subr.mxu0 0.0
    %473 = vmatpush1.xpose.msra.mxu0 0.0
    %474 = vmatprep.subr.mxu0 0.0
    %475 = vmatpush1.xpose.msra.mxu0 0.0
    %476 = vmatprep.subr.mxu0 0.0
    %477 = vmatpush1.xpose.msra.mxu0 0.0
    %478 = vmatprep.subr.mxu0 0.0
    %479 = vmatpush1.xpose.msra.mxu0 0.0
    %480 = vmatprep.subr.mxu0 0.0
    %481 = vmatpush1.xpose.msra.mxu0 0.0
    %482 = vmatprep.subr.mxu0 0.0
    %483 = vmatpush1.xpose.msra.mxu0 0.0
    %484 = vmatprep.subr.mxu0 0.0
    %485 = vmatpush1.xpose.msra.mxu0 0.0
    %486 = vmatprep.mubr.f32.mxu0 0.0
    %v487 = vand.u32 %v42, 4294901760
    %488 = vmatmul.mubr.f32.gmra.mrb[0].mxu0 %v487
    %v489 = vpop.f32.mrb[0].mxu0
    %v490 = vadd.f32 %v418, %v489
    %v491 = vpop.f32.mrb[0].mxu0
    %492 = vdwg.mxu0
    %v494 = vsel %vm40, %v29, 0
    %v497 = vsel %vm40, %v31, 0
    %499 = vmatprep.subr.mxu0 0.0
    %v500 = vand.u32 %v497, 4294901760
    %501 = vmatpush1.xpose.msra.mxu0 %v500
    %502 = vmatprep.subr.mxu0 0.0
    %503 = vmatpush1.xpose.msra.mxu0 0.0
    %504 = vmatprep.subr.mxu0 0.0
    %505 = vmatpush1.xpose.msra.mxu0 0.0
    %506 = vmatprep.subr.mxu0 0.0
    %507 = vmatpush1.xpose.msra.mxu0 0.0
    %508 = vmatprep.subr.mxu0 0.0
    %509 = vmatpush1.xpose.msra.mxu0 0.0
    %510 = vmatprep.subr.mxu0 0.0
    %511 = vmatpush1.xpose.msra.mxu0 0.0
    %512 = vmatprep.subr.mxu0 0.0
    %513 = vmatpush1.xpose.msra.mxu0 0.0
    %514 = vmatprep.subr.mxu0 0.0
    %515 = vmatpush1.xpose.msra.mxu0 0.0
    %516 = vmatprep.subr.mxu0 0.0
    %517 = vmatpush1.xpose.msra.mxu0 0.0
    %518 = vmatprep.subr.mxu0 0.0
    %519 = vmatpush1.xpose.msra.mxu0 0.0
    %520 = vmatprep.subr.mxu0 0.0
    %521 = vmatpush1.xpose.msra.mxu0 0.0
    %522 = vmatprep.subr.mxu0 0.0
    %523 = vmatpush1.xpose.msra.mxu0 0.0
    %524 = vmatprep.subr.mxu0 0.0
    %525 = vmatpush1.xpose.msra.mxu0 0.0
    %526 = vmatprep.subr.mxu0 0.0
    %527 = vmatpush1.xpose.msra.mxu0 0.0
    %528 = vmatprep.subr.mxu0 0.0
    %529 = vmatpush1.xpose.msra.mxu0 0.0
    %530 = vmatprep.subr.mxu0 0.0
    %531 = vmatpush1.xpose.msra.mxu0 0.0
    %532 = vmatprep.subr.mxu0 0.0
    %533 = vmatpush1.xpose.msra.mxu0 0.0
    %534 = vmatprep.subr.mxu0 0.0
    %535 = vmatpush1.xpose.msra.mxu0 0.0
    %536 = vmatprep.subr.mxu0 0.0
    %537 = vmatpush1.xpose.msra.mxu0 0.0
    %538 = vmatprep.subr.mxu0 0.0
    %539 = vmatpush1.xpose.msra.mxu0 0.0
    %540 = vmatprep.subr.mxu0 0.0
    %541 = vmatpush1.xpose.msra.mxu0 0.0
    %542 = vmatprep.subr.mxu0 0.0
    %543 = vmatpush1.xpose.msra.mxu0 0.0
    %544 = vmatprep.subr.mxu0 0.0
    %545 = vmatpush1.xpose.msra.mxu0 0.0
    %546 = vmatprep.subr.mxu0 0.0
    %547 = vmatpush1.xpose.msra.mxu0 0.0
    %548 = vmatprep.subr.mxu0 0.0
    %549 = vmatpush1.xpose.msra.mxu0 0.0
    %550 = vmatprep.subr.mxu0 0.0
    %551 = vmatpush1.xpose.msra.mxu0 0.0
    %552 = vmatprep.subr.mxu0 0.0
    %553 = vmatpush1.xpose.msra.mxu0 0.0
    %554 = vmatprep.subr.mxu0 0.0
    %555 = vmatpush1.xpose.msra.mxu0 0.0
    %556 = vmatprep.subr.mxu0 0.0
    %557 = vmatpush1.xpose.msra.mxu0 0.0
    %558 = vmatprep.subr.mxu0 0.0
    %559 = vmatpush1.xpose.msra.mxu0 0.0
    %560 = vmatprep.subr.mxu0 0.0
    %561 = vmatpush1.xpose.msra.mxu0 0.0
    %562 = vmatprep.subr.mxu0 0.0
    %563 = vmatpush1.xpose.msra.mxu0 0.0
    %564 = vmatprep.mubr.f32.mxu0 0.0
    %v565 = vand.u32 %v494, 4294901760
    %v566 = vsub.f32 %v494, %v565
    %v567 = vand.u32 %v566, 4294901760
    %v568 = vsub.f32 %v566, %v567
    %v569 = vand.u32 %v568, 4294901760
    %570 = vmatmul.mubr.f32.gmra.mrb[0].mxu0 %v569
    %v571 = vpop.f32.mrb[0].mxu0
    %v572 = vadd.f32 0.0, %v571
    %v573 = vpop.f32.mrb[0].mxu0
    %574 = vdwg.mxu0
    %575 = vmatprep.subr.mxu0 0.0
    %v576 = vand.u32 %v497, 4294901760
    %v577 = vsub.f32 %v497, %v576
    %v578 = vand.u32 %v577, 4294901760
    %v579 = vsub.f32 %v577, %v578
    %v580 = vand.u32 %v579, 4294901760
    %581 = vmatpush1.xpose.msra.mxu0 %v580
    %582 = vmatprep.subr.mxu0 0.0
    %583 = vmatpush1.xpose.msra.mxu0 0.0
    %584 = vmatprep.subr.mxu0 0.0
    %585 = vmatpush1.xpose.msra.mxu0 0.0
    %586 = vmatprep.subr.mxu0 0.0
    %587 = vmatpush1.xpose.msra.mxu0 0.0
    %588 = vmatprep.subr.mxu0 0.0
    %589 = vmatpush1.xpose.msra.mxu0 0.0
    %590 = vmatprep.subr.mxu0 0.0
    %591 = vmatpush1.xpose.msra.mxu0 0.0
    %592 = vmatprep.subr.mxu0 0.0
    %593 = vmatpush1.xpose.msra.mxu0 0.0
    %594 = vmatprep.subr.mxu0 0.0
    %595 = vmatpush1.xpose.msra.mxu0 0.0
    %596 = vmatprep.subr.mxu0 0.0
    %597 = vmatpush1.xpose.msra.mxu0 0.0
    %598 = vmatprep.subr.mxu0 0.0
    %599 = vmatpush1.xpose.msra.mxu0 0.0
    %600 = vmatprep.subr.mxu0 0.0
    %601 = vmatpush1.xpose.msra.mxu0 0.0
    %602 = vmatprep.subr.mxu0 0.0
    %603 = vmatpush1.xpose.msra.mxu0 0.0
    %604 = vmatprep.subr.mxu0 0.0
    %605 = vmatpush1.xpose.msra.mxu0 0.0
    %606 = vmatprep.subr.mxu0 0.0
    %607 = vmatpush1.xpose.msra.mxu0 0.0
    %608 = vmatprep.subr.mxu0 0.0
    %609 = vmatpush1.xpose.msra.mxu0 0.0
    %610 = vmatprep.subr.mxu0 0.0
    %611 = vmatpush1.xpose.msra.mxu0 0.0
    %612 = vmatprep.subr.mxu0 0.0
    %613 = vmatpush1.xpose.msra.mxu0 0.0
    %614 = vmatprep.subr.mxu0 0.0
    %615 = vmatpush1.xpose.msra.mxu0 0.0
    %616 = vmatprep.subr.mxu0 0.0
    %617 = vmatpush1.xpose.msra.mxu0 0.0
    %618 = vmatprep.subr.mxu0 0.0
    %619 = vmatpush1.xpose.msra.mxu0 0.0
    %620 = vmatprep.subr.mxu0 0.0
    %621 = vmatpush1.xpose.msra.mxu0 0.0
    %622 = vmatprep.subr.mxu0 0.0
    %623 = vmatpush1.xpose.msra.mxu0 0.0
    %624 = vmatprep.subr.mxu0 0.0
    %625 = vmatpush1.xpose.msra.mxu0 0.0
    %626 = vmatprep.subr.mxu0 0.0
    %627 = vmatpush1.xpose.msra.mxu0 0.0
    %628 = vmatprep.subr.mxu0 0.0
    %629 = vmatpush1.xpose.msra.mxu0 0.0
    %630 = vmatprep.subr.mxu0 0.0
    %631 = vmatpush1.xpose.msra.mxu0 0.0
    %632 = vmatprep.subr.mxu0 0.0
    %633 = vmatpush1.xpose.msra.mxu0 0.0
    %634 = vmatprep.subr.mxu0 0.0
    %635 = vmatpush1.xpose.msra.mxu0 0.0
    %636 = vmatprep.subr.mxu0 0.0
    %637 = vmatpush1.xpose.msra.mxu0 0.0
    %638 = vmatprep.subr.mxu0 0.0
    %639 = vmatpush1.xpose.msra.mxu0 0.0
    %640 = vmatprep.subr.mxu0 0.0
    %641 = vmatpush1.xpose.msra.mxu0 0.0
    %642 = vmatprep.subr.mxu0 0.0
    %643 = vmatpush1.xpose.msra.mxu0 0.0
    %644 = vmatprep.mubr.f32.mxu0 0.0
    %v645 = vand.u32 %v494, 4294901760
    %646 = vmatmul.mubr.f32.gmra.mrb[0].mxu0 %v645
    %v647 = vpop.f32.mrb[0].mxu0
    %v648 = vadd.f32 %v572, %v647
    %v649 = vpop.f32.mrb[0].mxu0
    %650 = vdwg.mxu0
    %651 = vmatprep.subr.mxu0 0.0
    %v652 = vand.u32 %v497, 4294901760
    %v653 = vsub.f32 %v497, %v652
    %654 = vmatpush1.xpose.msra.mxu0 %v653
    %655 = vmatprep.subr.mxu0 0.0
    %656 = vmatpush1.xpose.msra.mxu0 0.0
    %657 = vmatprep.subr.mxu0 0.0
    %658 = vmatpush1.xpose.msra.mxu0 0.0
    %659 = vmatprep.subr.mxu0 0.0
    %660 = vmatpush1.xpose.msra.mxu0 0.0
    %661 = vmatprep.subr.mxu0 0.0
    %662 = vmatpush1.xpose.msra.mxu0 0.0
    %663 = vmatprep.subr.mxu0 0.0
    %664 = vmatpush1.xpose.msra.mxu0 0.0
    %665 = vmatprep.subr.mxu0 0.0
    %666 = vmatpush1.xpose.msra.mxu0 0.0
    %667 = vmatprep.subr.mxu0 0.0
    %668 = vmatpush1.xpose.msra.mxu0 0.0
    %669 = vmatprep.subr.mxu0 0.0
    %670 = vmatpush1.xpose.msra.mxu0 0.0
    %671 = vmatprep.subr.mxu0 0.0
    %672 = vmatpush1.xpose.msra.mxu0 0.0
    %673 = vmatprep.subr.mxu0 0.0
    %674 = vmatpush1.xpose.msra.mxu0 0.0
    %675 = vmatprep.subr.mxu0 0.0
    %676 = vmatpush1.xpose.msra.mxu0 0.0
    %677 = vmatprep.subr.mxu0 0.0
    %678 = vmatpush1.xpose.msra.mxu0 0.0
    %679 = vmatprep.subr.mxu0 0.0
    %680 = vmatpush1.xpose.msra.mxu0 0.0
    %681 = vmatprep.subr.mxu0 0.0
    %682 = vmatpush1.xpose.msra.mxu0 0.0
    %683 = vmatprep.subr.mxu0 0.0
    %684 = vmatpush1.xpose.msra.mxu0 0.0
    %685 = vmatprep.subr.mxu0 0.0
    %686 = vmatpush1.xpose.msra.mxu0 0.0
    %687 = vmatprep.subr.mxu0 0.0
    %688 = vmatpush1.xpose.msra.mxu0 0.0
    %689 = vmatprep.subr.mxu0 0.0
    %690 = vmatpush1.xpose.msra.mxu0 0.0
    %691 = vmatprep.subr.mxu0 0.0
    %692 = vmatpush1.xpose.msra.mxu0 0.0
    %693 = vmatprep.subr.mxu0 0.0
    %694 = vmatpush1.xpose.msra.mxu0 0.0
    %695 = vmatprep.subr.mxu0 0.0
    %696 = vmatpush1.xpose.msra.mxu0 0.0
    %697 = vmatprep.subr.mxu0 0.0
    %698 = vmatpush1.xpose.msra.mxu0 0.0
    %699 = vmatprep.subr.mxu0 0.0
    %700 = vmatpush1.xpose.msra.mxu0 0.0
    %701 = vmatprep.subr.mxu0 0.0
    %702 = vmatpush1.xpose.msra.mxu0 0.0
    %703 = vmatprep.subr.mxu0 0.0
    %704 = vmatpush1.xpose.msra.mxu0 0.0
    %705 = vmatprep.subr.mxu0 0.0
    %706 = vmatpush1.xpose.msra.mxu0 0.0
    %707 = vmatprep.subr.mxu0 0.0
    %708 = vmatpush1.xpose.msra.mxu0 0.0
    %709 = vmatprep.subr.mxu0 0.0
    %710 = vmatpush1.xpose.msra.mxu0 0.0
    %711 = vmatprep.subr.mxu0 0.0
    %712 = vmatpush1.xpose.msra.mxu0 0.0
    %713 = vmatprep.subr.mxu0 0.0
    %714 = vmatpush1.xpose.msra.mxu0 0.0
    %715 = vmatprep.subr.mxu0 0.0
    %716 = vmatpush1.xpose.msra.mxu0 0.0
    %717 = vmatprep.mubr.f32.mxu0 0.0
    %v718 = vand.u32 %v494, 4294901760
    %v719 = vsub.f32 %v494, %v718
    %720 = vmatmul.mubr.f32.gmra.mrb[0].mxu0 %v719
    %v721 = vpop.f32.mrb[0].mxu0
    %v722 = vadd.f32 %v648, %v721
    %v723 = vpop.f32.mrb[0].mxu0
    %724 = vdwg.mxu0
    %725 = vmatprep.subr.mxu0 0.0
    %v726 = vand.u32 %v497, 4294901760
    %727 = vmatpush1.xpose.msra.mxu0 %v726
    %728 = vmatprep.subr.mxu0 0.0
    %729 = vmatpush1.xpose.msra.mxu0 0.0
    %730 = vmatprep.subr.mxu0 0.0
    %731 = vmatpush1.xpose.msra.mxu0 0.0
    %732 = vmatprep.subr.mxu0 0.0
    %733 = vmatpush1.xpose.msra.mxu0 0.0
    %734 = vmatprep.subr.mxu0 0.0
    %735 = vmatpush1.xpose.msra.mxu0 0.0
    %736 = vmatprep.subr.mxu0 0.0
    %737 = vmatpush1.xpose.msra.mxu0 0.0
    %738 = vmatprep.subr.mxu0 0.0
    %739 = vmatpush1.xpose.msra.mxu0 0.0
    %740 = vmatprep.subr.mxu0 0.0
    %741 = vmatpush1.xpose.msra.mxu0 0.0
    %742 = vmatprep.subr.mxu0 0.0
    %743 = vmatpush1.xpose.msra.mxu0 0.0
    %744 = vmatprep.subr.mxu0 0.0
    %745 = vmatpush1.xpose.msra.mxu0 0.0
    %746 = vmatprep.subr.mxu0 0.0
    %747 = vmatpush1.xpose.msra.mxu0 0.0
    %748 = vmatprep.subr.mxu0 0.0
    %749 = vmatpush1.xpose.msra.mxu0 0.0
    %750 = vmatprep.subr.mxu0 0.0
    %751 = vmatpush1.xpose.msra.mxu0 0.0
    %752 = vmatprep.subr.mxu0 0.0
    %753 = vmatpush1.xpose.msra.mxu0 0.0
    %754 = vmatprep.subr.mxu0 0.0
    %755 = vmatpush1.xpose.msra.mxu0 0.0
    %756 = vmatprep.subr.mxu0 0.0
    %757 = vmatpush1.xpose.msra.mxu0 0.0
    %758 = vmatprep.subr.mxu0 0.0
    %759 = vmatpush1.xpose.msra.mxu0 0.0
    %760 = vmatprep.subr.mxu0 0.0
    %761 = vmatpush1.xpose.msra.mxu0 0.0
    %762 = vmatprep.subr.mxu0 0.0
    %763 = vmatpush1.xpose.msra.mxu0 0.0
    %764 = vmatprep.subr.mxu0 0.0
    %765 = vmatpush1.xpose.msra.mxu0 0.0
    %766 = vmatprep.subr.mxu0 0.0
    %767 = vmatpush1.xpose.msra.mxu0 0.0
    %768 = vmatprep.subr.mxu0 0.0
    %769 = vmatpush1.xpose.msra.mxu0 0.0
    %770 = vmatprep.subr.mxu0 0.0
    %771 = vmatpush1.xpose.msra.mxu0 0.0
    %772 = vmatprep.subr.mxu0 0.0
    %773 = vmatpush1.xpose.msra.mxu0 0.0
    %774 = vmatprep.subr.mxu0 0.0
    %775 = vmatpush1.xpose.msra.mxu0 0.0
    %776 = vmatprep.subr.mxu0 0.0
    %777 = vmatpush1.xpose.msra.mxu0 0.0
    %778 = vmatprep.subr.mxu0 0.0
    %779 = vmatpush1.xpose.msra.mxu0 0.0
    %780 = vmatprep.subr.mxu0 0.0
    %781 = vmatpush1.xpose.msra.mxu0 0.0
    %782 = vmatprep.subr.mxu0 0.0
    %783 = vmatpush1.xpose.msra.mxu0 0.0
    %784 = vmatprep.subr.mxu0 0.0
    %785 = vmatpush1.xpose.msra.mxu0 0.0
    %786 = vmatprep.subr.mxu0 0.0
    %787 = vmatpush1.xpose.msra.mxu0 0.0
    %788 = vmatprep.subr.mxu0 0.0
    %789 = vmatpush1.xpose.msra.mxu0 0.0
    %790 = vmatprep.mubr.f32.mxu0 0.0
    %v791 = vand.u32 %v494, 4294901760
    %v792 = vsub.f32 %v494, %v791
    %v793 = vand.u32 %v792, 4294901760
    %794 = vmatmul.mubr.f32.gmra.mrb[0].mxu0 %v793
    %v795 = vpop.f32.mrb[0].mxu0
    %v796 = vadd.f32 %v722, %v795
    %v797 = vpop.f32.mrb[0].mxu0
    %798 = vdwg.mxu0
    %799 = vmatprep.subr.mxu0 0.0
    %v800 = vand.u32 %v497, 4294901760
    %v801 = vsub.f32 %v497, %v800
    %v802 = vand.u32 %v801, 4294901760
    %803 = vmatpush1.xpose.msra.mxu0 %v802
    %804 = vmatprep.subr.mxu0 0.0
    %805 = vmatpush1.xpose.msra.mxu0 0.0
    %806 = vmatprep.subr.mxu0 0.0
    %807 = vmatpush1.xpose.msra.mxu0 0.0
    %808 = vmatprep.subr.mxu0 0.0
    %809 = vmatpush1.xpose.msra.mxu0 0.0
    %810 = vmatprep.subr.mxu0 0.0
    %811 = vmatpush1.xpose.msra.mxu0 0.0
    %812 = vmatprep.subr.mxu0 0.0
    %813 = vmatpush1.xpose.msra.mxu0 0.0
    %814 = vmatprep.subr.mxu0 0.0
    %815 = vmatpush1.xpose.msra.mxu0 0.0
    %816 = vmatprep.subr.mxu0 0.0
    %817 = vmatpush1.xpose.msra.mxu0 0.0
    %818 = vmatprep.subr.mxu0 0.0
    %819 = vmatpush1.xpose.msra.mxu0 0.0
    %820 = vmatprep.subr.mxu0 0.0
    %821 = vmatpush1.xpose.msra.mxu0 0.0
    %822 = vmatprep.subr.mxu0 0.0
    %823 = vmatpush1.xpose.msra.mxu0 0.0
    %824 = vmatprep.subr.mxu0 0.0
    %825 = vmatpush1.xpose.msra.mxu0 0.0
    %826 = vmatprep.subr.mxu0 0.0
    %827 = vmatpush1.xpose.msra.mxu0 0.0
    %828 = vmatprep.subr.mxu0 0.0
    %829 = vmatpush1.xpose.msra.mxu0 0.0
    %830 = vmatprep.subr.mxu0 0.0
    %831 = vmatpush1.xpose.msra.mxu0 0.0
    %832 = vmatprep.subr.mxu0 0.0
    %833 = vmatpush1.xpose.msra.mxu0 0.0
    %834 = vmatprep.subr.mxu0 0.0
    %835 = vmatpush1.xpose.msra.mxu0 0.0
    %836 = vmatprep.subr.mxu0 0.0
    %837 = vmatpush1.xpose.msra.mxu0 0.0
    %838 = vmatprep.subr.mxu0 0.0
    %839 = vmatpush1.xpose.msra.mxu0 0.0
    %840 = vmatprep.subr.mxu0 0.0
    %841 = vmatpush1.xpose.msra.mxu0 0.0
    %842 = vmatprep.subr.mxu0 0.0
    %843 = vmatpush1.xpose.msra.mxu0 0.0
    %844 = vmatprep.subr.mxu0 0.0
    %845 = vmatpush1.xpose.msra.mxu0 0.0
    %846 = vmatprep.subr.mxu0 0.0
    %847 = vmatpush1.xpose.msra.mxu0 0.0
    %848 = vmatprep.subr.mxu0 0.0
    %849 = vmatpush1.xpose.msra.mxu0 0.0
    %850 = vmatprep.subr.mxu0 0.0
    %851 = vmatpush1.xpose.msra.mxu0 0.0
    %852 = vmatprep.subr.mxu0 0.0
    %853 = vmatpush1.xpose.msra.mxu0 0.0
    %854 = vmatprep.subr.mxu0 0.0
    %855 = vmatpush1.xpose.msra.mxu0 0.0
    %856 = vmatprep.subr.mxu0 0.0
    %857 = vmatpush1.xpose.msra.mxu0 0.0
    %858 = vmatprep.subr.mxu0 0.0
    %859 = vmatpush1.xpose.msra.mxu0 0.0
    %860 = vmatprep.subr.mxu0 0.0
    %861 = vmatpush1.xpose.msra.mxu0 0.0
    %862 = vmatprep.subr.mxu0 0.0
    %863 = vmatpush1.xpose.msra.mxu0 0.0
    %864 = vmatprep.subr.mxu0 0.0
    %865 = vmatpush1.xpose.msra.mxu0 0.0
    %866 = vmatprep.mubr.f32.mxu0 0.0
    %v867 = vand.u32 %v494, 4294901760
    %868 = vmatmul.mubr.f32.gmra.mrb[0].mxu0 %v867
    %v869 = vpop.f32.mrb[0].mxu0
    %v870 = vadd.f32 %v796, %v869
    %v871 = vpop.f32.mrb[0].mxu0
    %872 = vdwg.mxu0
    %873 = vmatprep.subr.mxu0 0.0
    %v874 = vand.u32 %v497, 4294901760
    %875 = vmatpush1.xpose.msra.mxu0 %v874
    %876 = vmatprep.subr.mxu0 0.0
    %877 = vmatpush1.xpose.msra.mxu0 0.0
    %878 = vmatprep.subr.mxu0 0.0
    %879 = vmatpush1.xpose.msra.mxu0 0.0
    %880 = vmatprep.subr.mxu0 0.0
    %881 = vmatpush1.xpose.msra.mxu0 0.0
    %882 = vmatprep.subr.mxu0 0.0
    %883 = vmatpush1.xpose.msra.mxu0 0.0
    %884 = vmatprep.subr.mxu0 0.0
    %885 = vmatpush1.xpose.msra.mxu0 0.0
    %886 = vmatprep.subr.mxu0 0.0
    %887 = vmatpush1.xpose.msra.mxu0 0.0
    %888 = vmatprep.subr.mxu0 0.0
    %889 = vmatpush1.xpose.msra.mxu0 0.0
    %890 = vmatprep.subr.mxu0 0.0
    %891 = vmatpush1.xpose.msra.mxu0 0.0
    %892 = vmatprep.subr.mxu0 0.0
    %893 = vmatpush1.xpose.msra.mxu0 0.0
    %894 = vmatprep.subr.mxu0 0.0
    %895 = vmatpush1.xpose.msra.mxu0 0.0
    %896 = vmatprep.subr.mxu0 0.0
    %897 = vmatpush1.xpose.msra.mxu0 0.0
    %898 = vmatprep.subr.mxu0 0.0
    %899 = vmatpush1.xpose.msra.mxu0 0.0
    %900 = vmatprep.subr.mxu0 0.0
    %901 = vmatpush1.xpose.msra.mxu0 0.0
    %902 = vmatprep.subr.mxu0 0.0
    %903 = vmatpush1.xpose.msra.mxu0 0.0
    %904 = vmatprep.subr.mxu0 0.0
    %905 = vmatpush1.xpose.msra.mxu0 0.0
    %906 = vmatprep.subr.mxu0 0.0
    %907 = vmatpush1.xpose.msra.mxu0 0.0
    %908 = vmatprep.subr.mxu0 0.0
    %909 = vmatpush1.xpose.msra.mxu0 0.0
    %910 = vmatprep.subr.mxu0 0.0
    %911 = vmatpush1.xpose.msra.mxu0 0.0
    %912 = vmatprep.subr.mxu0 0.0
    %913 = vmatpush1.xpose.msra.mxu0 0.0
    %914 = vmatprep.subr.mxu0 0.0
    %915 = vmatpush1.xpose.msra.mxu0 0.0
    %916 = vmatprep.subr.mxu0 0.0
    %917 = vmatpush1.xpose.msra.mxu0 0.0
    %918 = vmatprep.subr.mxu0 0.0
    %919 = vmatpush1.xpose.msra.mxu0 0.0
    %920 = vmatprep.subr.mxu0 0.0
    %921 = vmatpush1.xpose.msra.mxu0 0.0
    %922 = vmatprep.subr.mxu0 0.0
    %923 = vmatpush1.xpose.msra.mxu0 0.0
    %924 = vmatprep.subr.mxu0 0.0
    %925 = vmatpush1.xpose.msra.mxu0 0.0
    %926 = vmatprep.subr.mxu0 0.0
    %927 = vmatpush1.xpose.msra.mxu0 0.0
    %928 = vmatprep.subr.mxu0 0.0
    %929 = vmatpush1.xpose.msra.mxu0 0.0
    %930 = vmatprep.subr.mxu0 0.0
    %931 = vmatpush1.xpose.msra.mxu0 0.0
    %932 = vmatprep.subr.mxu0 0.0
    %933 = vmatpush1.xpose.msra.mxu0 0.0
    %934 = vmatprep.subr.mxu0 0.0
    %935 = vmatpush1.xpose.msra.mxu0 0.0
    %936 = vmatprep.subr.mxu0 0.0
    %937 = vmatpush1.xpose.msra.mxu0 0.0
    %938 = vmatprep.mubr.f32.mxu0 0.0
    %v939 = vand.u32 %v494, 4294901760
    %940 = vmatmul.mubr.f32.gmra.mrb[0].mxu0 %v939
    %v941 = vpop.f32.mrb[0].mxu0
    %v942 = vadd.f32 %v870, %v941
    %v943 = vpop.f32.mrb[0].mxu0
    %944 = vdwg.mxu0
    %v945 = vmul.f32 %v28, %v28
    %v946 = vmul.f32 %v29, %v29
    %v947 = vsel %vm40, %v945, 0.0
    %948 = vadd.xlane.f32.xlu0 %v947
    %v949 = vpop.xlane.xlu0 %948
    %v950 = vsel %vm40, %v946, 0.0
    %951 = vadd.xlane.f32.xlu0 %v950
    %v952 = vpop.xlane.xlu0 %951
    %v953 = vmul.f32 %v30, %v30
    %v954 = vmul.f32 %v31, %v31
    %v955 = vsel %vm40, %v953, 0.0
    %956 = vadd.xlane.f32.xlu0 %v955
    %v957 = vpop.xlane.xlu0 %956
    %v958 = vsel %vm40, %v954, 0.0
    %959 = vadd.xlane.f32.xlu0 %v958
    %v960 = vpop.xlane.xlu0 %959
    %v963 = vlaneseq
    %v964 = vand.u32 %v963, 127
    %v965 = vlaneseq
    %v966 = vshrl.u32 %v965, 7
    %v967 = vsub.s32 %v964, %v966
    %v968 = vrot.slane %v957, %v967
    %v969 = vlaneseq
    %v970 = vshrl.u32 %v969, 7
    %v971 = vsub.s32 %v964, %v970
    %v972 = vrot.slane %v960, %v971
    %vm973 = vcmask 1041409
    %vm974 = vcmask 1042434
    %v975 = vsel %vm974, %v968, %v968
    %vm976 = vcmask 1043459
    %v977 = vsel %vm976, %v968, %v975
    %vm978 = vcmask 1044484
    %v979 = vsel %vm978, %v968, %v977
    %vm980 = vcmask 1045509
    %v981 = vsel %vm980, %v968, %v979
    %vm982 = vcmask 1046534
    %v983 = vsel %vm982, %v968, %v981
    %vm984 = vcmask 1047559
    %v985 = vsel %vm984, %v968, %v983
    %v986 = vsel %vm974, %v972, %v972
    %v987 = vsel %vm976, %v972, %v986
    %v988 = vsel %vm978, %v972, %v987
    %v989 = vsel %vm980, %v972, %v988
    %v990 = vsel %vm982, %v972, %v989
    %v991 = vsel %vm984, %v972, %v990
    %v994 = vadd.f32 %v949, %v985
    %v995 = vadd.f32 %v952, %v991
    %v996 = vmul.f32 %v490, 2.0
    %v997 = vmul.f32 %v942, 2.0
    %v998 = vsub.f32 %v994, %v996
    %v999 = vsub.f32 %v995, %v997
    %v1000 = vmax.f32 %v998, 0.0
    %v1001 = vmax.f32 %v999, 0.0
    %v1002 = vld [vmem:[%s4] sm:$0xff]
    %v1003 = vld [vmem:[%s4 + $0x8] sm:$0xff]
    %v1004 = vld [vmem:[%s4 + $0x10] sm:$0xff]
    %v1005 = vld [vmem:[%s4 + $0x18] sm:$0xff]
    %v1008 = vcombine.high %v1000, %v1000
    %v1010 = vunpack.c.l.s4 1966171168
    %v1011 = vunpack.c.0.s8 %v1010
    %v1012 = vlaneseq
    %v1013 = vshrl.u32 %v1012, 7
    %v1014 = vsub.s32 %v1011, %v1013
    %v1015 = vrot.slane %v1000, %v1014
    %v1017 = vunpack.c.l.s4 1966171168
    %v1018 = vunpack.c.0.s8 %v1017
    %v1019 = vlaneseq
    %v1020 = vshrl.u32 %v1019, 7
    %v1021 = vsub.s32 %v1018, %v1020
    %v1022 = vrot.slane %v1008, %v1021
    %v1023 = vcombine.high %v1015, %v1015
    %v1024 = vcombine.high %v1022, %v1022
    %v1026 = vunpack.c.l.s4 1966171168
    %v1027 = vunpack.c.0.s8 %v1026
    %v1028 = vlaneseq
    %v1029 = vshrl.u32 %v1028, 7
    %v1030 = vsub.s32 %v1027, %v1029
    %v1031 = vrot.slane %v1015, %v1030
    %v1033 = vunpack.c.l.s4 1966171168
    %v1034 = vunpack.c.0.s8 %v1033
    %v1035 = vlaneseq
    %v1036 = vshrl.u32 %v1035, 7
    %v1037 = vsub.s32 %v1034, %v1036
    %v1038 = vrot.slane %v1022, %v1037
    %v1040 = vunpack.c.l.s4 1966171168
    %v1041 = vunpack.c.0.s8 %v1040
    %v1042 = vlaneseq
    %v1043 = vshrl.u32 %v1042, 7
    %v1044 = vsub.s32 %v1041, %v1043
    %v1045 = vrot.slane %v1023, %v1044
    %v1047 = vunpack.c.l.s4 1966171168
    %v1048 = vunpack.c.0.s8 %v1047
    %v1049 = vlaneseq
    %v1050 = vshrl.u32 %v1049, 7
    %v1051 = vsub.s32 %v1048, %v1050
    %v1052 = vrot.slane %v1024, %v1051
    %v1053 = vcombine.high %v1031, %v1031
    %v1054 = vcombine.high %v1038, %v1038
    %v1055 = vcombine.high %v1045, %v1045
    %v1056 = vcombine.high %v1052, %v1052
    %v1057 = vcombine.high %v1001, %v1001
    %v1059 = vunpack.c.l.s4 1966171168
    %v1060 = vunpack.c.0.s8 %v1059
    %v1061 = vlaneseq
    %v1062 = vshrl.u32 %v1061, 7
    %v1063 = vsub.s32 %v1060, %v1062
    %v1064 = vrot.slane %v1001, %v1063
    %v1066 = vunpack.c.l.s4 1966171168
    %v1067 = vunpack.c.0.s8 %v1066
    %v1068 = vlaneseq
    %v1069 = vshrl.u32 %v1068, 7
    %v1070 = vsub.s32 %v1067, %v1069
    %v1071 = vrot.slane %v1057, %v1070
    %v1072 = vcombine.high %v1064, %v1064
    %v1073 = vcombine.high %v1071, %v1071
    %v1075 = vunpack.c.l.s4 1966171168
    %v1076 = vunpack.c.0.s8 %v1075
    %v1077 = vlaneseq
    %v1078 = vshrl.u32 %v1077, 7
    %v1079 = vsub.s32 %v1076, %v1078
    %v1080 = vrot.slane %v1064, %v1079
    %v1082 = vunpack.c.l.s4 1966171168
    %v1083 = vunpack.c.0.s8 %v1082
    %v1084 = vlaneseq
    %v1085 = vshrl.u32 %v1084, 7
    %v1086 = vsub.s32 %v1083, %v1085
    %v1087 = vrot.slane %v1071, %v1086
    %v1089 = vunpack.c.l.s4 1966171168
    %v1090 = vunpack.c.0.s8 %v1089
    %v1091 = vlaneseq
    %v1092 = vshrl.u32 %v1091, 7
    %v1093 = vsub.s32 %v1090, %v1092
    %v1094 = vrot.slane %v1072, %v1093
    %v1096 = vunpack.c.l.s4 1966171168
    %v1097 = vunpack.c.0.s8 %v1096
    %v1098 = vlaneseq
    %v1099 = vshrl.u32 %v1098, 7
    %v1100 = vsub.s32 %v1097, %v1099
    %v1101 = vrot.slane %v1073, %v1100
    %v1102 = vcombine.high %v1080, %v1080
    %v1103 = vcombine.high %v1087, %v1087
    %v1104 = vcombine.high %v1094, %v1094
    %v1105 = vcombine.high %v1101, %v1101
    %v1106 = vlaneseq
    %v1107 = vshrl.u32 %v1106, 7
    %v1108 = vsub.s32 0, %v1107
    %v1109 = vrot.slane %v1031, %v1108
    %v1110 = vlaneseq
    %v1111 = vshrl.u32 %v1110, 7
    %v1112 = vsub.s32 0, %v1111
    %v1113 = vrot.slane %v1045, %v1112
    %v1114 = vlaneseq
    %v1115 = vshrl.u32 %v1114, 7
    %v1116 = vsub.s32 0, %v1115
    %v1117 = vrot.slane %v1053, %v1116
    %v1118 = vlaneseq
    %v1119 = vshrl.u32 %v1118, 7
    %v1120 = vsub.s32 0, %v1119
    %v1121 = vrot.slane %v1055, %v1120
    %v1122 = vlaneseq
    %v1123 = vshrl.u32 %v1122, 7
    %v1124 = vsub.s32 0, %v1123
    %v1125 = vrot.slane %v1038, %v1124
    %v1126 = vlaneseq
    %v1127 = vshrl.u32 %v1126, 7
    %v1128 = vsub.s32 0, %v1127
    %v1129 = vrot.slane %v1052, %v1128
    %v1130 = vlaneseq
    %v1131 = vshrl.u32 %v1130, 7
    %v1132 = vsub.s32 0, %v1131
    %v1133 = vrot.slane %v1054, %v1132
    %v1134 = vlaneseq
    %v1135 = vshrl.u32 %v1134, 7
    %v1136 = vsub.s32 0, %v1135
    %v1137 = vrot.slane %v1056, %v1136
    %v1138 = vlaneseq
    %v1139 = vshrl.u32 %v1138, 7
    %v1140 = vsub.s32 0, %v1139
    %v1141 = vrot.slane %v1080, %v1140
    %v1142 = vlaneseq
    %v1143 = vshrl.u32 %v1142, 7
    %v1144 = vsub.s32 0, %v1143
    %v1145 = vrot.slane %v1094, %v1144
    %v1146 = vlaneseq
    %v1147 = vshrl.u32 %v1146, 7
    %v1148 = vsub.s32 0, %v1147
    %v1149 = vrot.slane %v1102, %v1148
    %v1150 = vlaneseq
    %v1151 = vshrl.u32 %v1150, 7
    %v1152 = vsub.s32 0, %v1151
    %v1153 = vrot.slane %v1104, %v1152
    %v1154 = vlaneseq
    %v1155 = vshrl.u32 %v1154, 7
    %v1156 = vsub.s32 0, %v1155
    %v1157 = vrot.slane %v1087, %v1156
    %v1158 = vlaneseq
    %v1159 = vshrl.u32 %v1158, 7
    %v1160 = vsub.s32 0, %v1159
    %v1161 = vrot.slane %v1101, %v1160
    %v1162 = vlaneseq
    %v1163 = vshrl.u32 %v1162, 7
    %v1164 = vsub.s32 0, %v1163
    %v1165 = vrot.slane %v1103, %v1164
    %v1166 = vlaneseq
    %v1167 = vshrl.u32 %v1166, 7
    %v1168 = vsub.s32 0, %v1167
    %v1169 = vrot.slane %v1105, %v1168
    %1187 = vset.pattern.permute.xlu0 0
    %1188 = vperm.xlu0 %1187, %v1002
    %v1189 = vpop.permute.xlu0 %1188
    %1192 = vset.pattern.permute.xlu0 0
    %1193 = vperm.xlu0 %1192, %v1003
    %v1194 = vpop.permute.xlu0 %1193
    %1197 = vset.pattern.permute.xlu0 0
    %1198 = vperm.xlu0 %1197, %v1004
    %v1199 = vpop.permute.xlu0 %1198
    %1202 = vset.pattern.permute.xlu0 0
    %1203 = vperm.xlu0 %1202, %v1005
    %v1204 = vpop.permute.xlu0 %1203
    %v1206 = vsub.f32 %v1109, %v1189
    %v1207 = vsub.f32 %v1109, %v1194
    %v1208 = vsub.f32 %v1109, %v1199
    %v1209 = vsub.f32 %v1109, %v1204
    %v1210 = vsub.f32 %v1113, %v1189
    %v1211 = vsub.f32 %v1113, %v1194
    %v1212 = vsub.f32 %v1113, %v1199
    %v1213 = vsub.f32 %v1113, %v1204
    %v1214 = vsub.f32 %v1117, %v1189
    %v1215 = vsub.f32 %v1117, %v1194
    %v1216 = vsub.f32 %v1117, %v1199
    %v1217 = vsub.f32 %v1117, %v1204
    %v1218 = vsub.f32 %v1121, %v1189
    %v1219 = vsub.f32 %v1121, %v1194
    %v1220 = vsub.f32 %v1121, %v1199
    %v1221 = vsub.f32 %v1121, %v1204
    %v1222 = vsub.f32 %v1125, %v1189
    %v1223 = vsub.f32 %v1125, %v1194
    %v1224 = vsub.f32 %v1125, %v1199
    %v1225 = vsub.f32 %v1125, %v1204
    %v1226 = vsub.f32 %v1129, %v1189
    %v1227 = vsub.f32 %v1129, %v1194
    %v1228 = vsub.f32 %v1129, %v1199
    %v1229 = vsub.f32 %v1129, %v1204
    %v1230 = vsub.f32 %v1133, %v1189
    %v1231 = vsub.f32 %v1133, %v1194
    %v1232 = vsub.f32 %v1133, %v1199
    %v1233 = vsub.f32 %v1133, %v1204
    %v1234 = vsub.f32 %v1137, %v1189
    %v1235 = vsub.f32 %v1137, %v1194
    %v1236 = vsub.f32 %v1137, %v1199
    %v1237 = vsub.f32 %v1137, %v1204
    %v1238 = vsub.f32 %v1141, %v1189
    %v1239 = vsub.f32 %v1141, %v1194
    %v1240 = vsub.f32 %v1141, %v1199
    %v1241 = vsub.f32 %v1141, %v1204
    %v1242 = vsub.f32 %v1145, %v1189
    %v1243 = vsub.f32 %v1145, %v1194
    %v1244 = vsub.f32 %v1145, %v1199
    %v1245 = vsub.f32 %v1145, %v1204
    %v1246 = vsub.f32 %v1149, %v1189
    %v1247 = vsub.f32 %v1149, %v1194
    %v1248 = vsub.f32 %v1149, %v1199
    %v1249 = vsub.f32 %v1149, %v1204
    %v1250 = vsub.f32 %v1153, %v1189
    %v1251 = vsub.f32 %v1153, %v1194
    %v1252 = vsub.f32 %v1153, %v1199
    %v1253 = vsub.f32 %v1153, %v1204
    %v1254 = vsub.f32 %v1157, %v1189
    %v1255 = vsub.f32 %v1157, %v1194
    %v1256 = vsub.f32 %v1157, %v1199
    %v1257 = vsub.f32 %v1157, %v1204
    %v1258 = vsub.f32 %v1161, %v1189
    %v1259 = vsub.f32 %v1161, %v1194
    %v1260 = vsub.f32 %v1161, %v1199
    %v1261 = vsub.f32 %v1161, %v1204
    %v1262 = vsub.f32 %v1165, %v1189
    %v1263 = vsub.f32 %v1165, %v1194
    %v1264 = vsub.f32 %v1165, %v1199
    %v1265 = vsub.f32 %v1165, %v1204
    %v1266 = vsub.f32 %v1169, %v1189
    %v1267 = vsub.f32 %v1169, %v1194
    %v1268 = vsub.f32 %v1169, %v1199
    %v1269 = vsub.f32 %v1169, %v1204
    %v1270 = vmul.f32 %v1206, -10.0
    %v1271 = vmul.f32 %v1207, -10.0
    %v1272 = vmul.f32 %v1208, -10.0
    %v1273 = vmul.f32 %v1209, -10.0
    %v1274 = vmul.f32 %v1210, -10.0
    %v1275 = vmul.f32 %v1211, -10.0
    %v1276 = vmul.f32 %v1212, -10.0
    %v1277 = vmul.f32 %v1213, -10.0
    %v1278 = vmul.f32 %v1214, -10.0
    %v1279 = vmul.f32 %v1215, -10.0
    %v1280 = vmul.f32 %v1216, -10.0
    %v1281 = vmul.f32 %v1217, -10.0
    %v1282 = vmul.f32 %v1218, -10.0
    %v1283 = vmul.f32 %v1219, -10.0
    %v1284 = vmul.f32 %v1220, -10.0
    %v1285 = vmul.f32 %v1221, -10.0
    %v1286 = vmul.f32 %v1222, -10.0
    %v1287 = vmul.f32 %v1223, -10.0
    %v1288 = vmul.f32 %v1224, -10.0
    %v1289 = vmul.f32 %v1225, -10.0
    %v1290 = vmul.f32 %v1226, -10.0
    %v1291 = vmul.f32 %v1227, -10.0
    %v1292 = vmul.f32 %v1228, -10.0
    %v1293 = vmul.f32 %v1229, -10.0
    %v1294 = vmul.f32 %v1230, -10.0
    %v1295 = vmul.f32 %v1231, -10.0
    %v1296 = vmul.f32 %v1232, -10.0
    %v1297 = vmul.f32 %v1233, -10.0
    %v1298 = vmul.f32 %v1234, -10.0
    %v1299 = vmul.f32 %v1235, -10.0
    %v1300 = vmul.f32 %v1236, -10.0
    %v1301 = vmul.f32 %v1237, -10.0
    %v1302 = vmul.f32 %v1238, -10.0
    %v1303 = vmul.f32 %v1239, -10.0
    %v1304 = vmul.f32 %v1240, -10.0
    %v1305 = vmul.f32 %v1241, -10.0
    %v1306 = vmul.f32 %v1242, -10.0
    %v1307 = vmul.f32 %v1243, -10.0
    %v1308 = vmul.f32 %v1244, -10.0
    %v1309 = vmul.f32 %v1245, -10.0
    %v1310 = vmul.f32 %v1246, -10.0
    %v1311 = vmul.f32 %v1247, -10.0
    %v1312 = vmul.f32 %v1248, -10.0
    %v1313 = vmul.f32 %v1249, -10.0
    %v1314 = vmul.f32 %v1250, -10.0
    %v1315 = vmul.f32 %v1251, -10.0
    %v1316 = vmul.f32 %v1252, -10.0
    %v1317 = vmul.f32 %v1253, -10.0
    %v1318 = vmul.f32 %v1254, -10.0
    %v1319 = vmul.f32 %v1255, -10.0
    %v1320 = vmul.f32 %v1256, -10.0
    %v1321 = vmul.f32 %v1257, -10.0
    %v1322 = vmul.f32 %v1258, -10.0
    %v1323 = vmul.f32 %v1259, -10.0
    %v1324 = vmul.f32 %v1260, -10.0
    %v1325 = vmul.f32 %v1261, -10.0
    %v1326 = vmul.f32 %v1262, -10.0
    %v1327 = vmul.f32 %v1263, -10.0
    %v1328 = vmul.f32 %v1264, -10.0
    %v1329 = vmul.f32 %v1265, -10.0
    %v1330 = vmul.f32 %v1266, -10.0
    %v1331 = vmul.f32 %v1267, -10.0
    %v1332 = vmul.f32 %v1268, -10.0
    %v1333 = vmul.f32 %v1269, -10.0
    %v1334 = vmul.f32 %v1270, %v1206
    %v1335 = vmul.f32 %v1271, %v1207
    %v1336 = vmul.f32 %v1272, %v1208
    %v1337 = vmul.f32 %v1273, %v1209
    %v1338 = vmul.f32 %v1274, %v1210
    %v1339 = vmul.f32 %v1275, %v1211
    %v1340 = vmul.f32 %v1276, %v1212
    %v1341 = vmul.f32 %v1277, %v1213
    %v1342 = vmul.f32 %v1278, %v1214
    %v1343 = vmul.f32 %v1279, %v1215
    %v1344 = vmul.f32 %v1280, %v1216
    %v1345 = vmul.f32 %v1281, %v1217
    %v1346 = vmul.f32 %v1282, %v1218
    %v1347 = vmul.f32 %v1283, %v1219
    %v1348 = vmul.f32 %v1284, %v1220
    %v1349 = vmul.f32 %v1285, %v1221
    %v1350 = vmul.f32 %v1286, %v1222
    %v1351 = vmul.f32 %v1287, %v1223
    %v1352 = vmul.f32 %v1288, %v1224
    %v1353 = vmul.f32 %v1289, %v1225
    %v1354 = vmul.f32 %v1290, %v1226
    %v1355 = vmul.f32 %v1291, %v1227
    %v1356 = vmul.f32 %v1292, %v1228
    %v1357 = vmul.f32 %v1293, %v1229
    %v1358 = vmul.f32 %v1294, %v1230
    %v1359 = vmul.f32 %v1295, %v1231
    %v1360 = vmul.f32 %v1296, %v1232
    %v1361 = vmul.f32 %v1297, %v1233
    %v1362 = vmul.f32 %v1298, %v1234
    %v1363 = vmul.f32 %v1299, %v1235
    %v1364 = vmul.f32 %v1300, %v1236
    %v1365 = vmul.f32 %v1301, %v1237
    %v1366 = vmul.f32 %v1302, %v1238
    %v1367 = vmul.f32 %v1303, %v1239
    %v1368 = vmul.f32 %v1304, %v1240
    %v1369 = vmul.f32 %v1305, %v1241
    %v1370 = vmul.f32 %v1306, %v1242
    %v1371 = vmul.f32 %v1307, %v1243
    %v1372 = vmul.f32 %v1308, %v1244
    %v1373 = vmul.f32 %v1309, %v1245
    %v1374 = vmul.f32 %v1310, %v1246
    %v1375 = vmul.f32 %v1311, %v1247
    %v1376 = vmul.f32 %v1312, %v1248
    %v1377 = vmul.f32 %v1313, %v1249
    %v1378 = vmul.f32 %v1314, %v1250
    %v1379 = vmul.f32 %v1315, %v1251
    %v1380 = vmul.f32 %v1316, %v1252
    %v1381 = vmul.f32 %v1317, %v1253
    %v1382 = vmul.f32 %v1318, %v1254
    %v1383 = vmul.f32 %v1319, %v1255
    %v1384 = vmul.f32 %v1320, %v1256
    %v1385 = vmul.f32 %v1321, %v1257
    %v1386 = vmul.f32 %v1322, %v1258
    %v1387 = vmul.f32 %v1323, %v1259
    %v1388 = vmul.f32 %v1324, %v1260
    %v1389 = vmul.f32 %v1325, %v1261
    %v1390 = vmul.f32 %v1326, %v1262
    %v1391 = vmul.f32 %v1327, %v1263
    %v1392 = vmul.f32 %v1328, %v1264
    %v1393 = vmul.f32 %v1329, %v1265
    %v1394 = vmul.f32 %v1330, %v1266
    %v1395 = vmul.f32 %v1331, %v1267
    %v1396 = vmul.f32 %v1332, %v1268
    %v1397 = vmul.f32 %v1333, %v1269
    %v1398 = vmul.f32 %v1334, 1.442695
    %v1399 = vpow.pop %v1398
    %v1400 = vmul.f32 %v1335, 1.442695
    %v1401 = vpow.pop %v1400
    %v1402 = vmul.f32 %v1336, 1.442695
    %v1403 = vpow.pop %v1402
    %v1404 = vmul.f32 %v1337, 1.442695
    %v1405 = vpow.pop %v1404
    %v1406 = vmul.f32 %v1338, 1.442695
    %v1407 = vpow.pop %v1406
    %v1408 = vmul.f32 %v1339, 1.442695
    %v1409 = vpow.pop %v1408
    %v1410 = vmul.f32 %v1340, 1.442695
    %v1411 = vpow.pop %v1410
    %v1412 = vmul.f32 %v1341, 1.442695
    %v1413 = vpow.pop %v1412
    %v1414 = vmul.f32 %v1342, 1.442695
    %v1415 = vpow.pop %v1414
    %v1416 = vmul.f32 %v1343, 1.442695
    %v1417 = vpow.pop %v1416
    %v1418 = vmul.f32 %v1344, 1.442695
    %v1419 = vpow.pop %v1418
    %v1420 = vmul.f32 %v1345, 1.442695
    %v1421 = vpow.pop %v1420
    %v1422 = vmul.f32 %v1346, 1.442695
    %v1423 = vpow.pop %v1422
    %v1424 = vmul.f32 %v1347, 1.442695
    %v1425 = vpow.pop %v1424
    %v1426 = vmul.f32 %v1348, 1.442695
    %v1427 = vpow.pop %v1426
    %v1428 = vmul.f32 %v1349, 1.442695
    %v1429 = vpow.pop %v1428
    %v1430 = vmul.f32 %v1350, 1.442695
    %v1431 = vpow.pop %v1430
    %v1432 = vmul.f32 %v1351, 1.442695
    %v1433 = vpow.pop %v1432
    %v1434 = vmul.f32 %v1352, 1.442695
    %v1435 = vpow.pop %v1434
    %v1436 = vmul.f32 %v1353, 1.442695
    %v1437 = vpow.pop %v1436
    %v1438 = vmul.f32 %v1354, 1.442695
    %v1439 = vpow.pop %v1438
    %v1440 = vmul.f32 %v1355, 1.442695
    %v1441 = vpow.pop %v1440
    %v1442 = vmul.f32 %v1356, 1.442695
    %v1443 = vpow.pop %v1442
    %v1444 = vmul.f32 %v1357, 1.442695
    %v1445 = vpow.pop %v1444
    %v1446 = vmul.f32 %v1358, 1.442695
    %v1447 = vpow.pop %v1446
    %v1448 = vmul.f32 %v1359, 1.442695
    %v1449 = vpow.pop %v1448
    %v1450 = vmul.f32 %v1360, 1.442695
    %v1451 = vpow.pop %v1450
    %v1452 = vmul.f32 %v1361, 1.442695
    %v1453 = vpow.pop %v1452
    %v1454 = vmul.f32 %v1362, 1.442695
    %v1455 = vpow.pop %v1454
    %v1456 = vmul.f32 %v1363, 1.442695
    %v1457 = vpow.pop %v1456
    %v1458 = vmul.f32 %v1364, 1.442695
    %v1459 = vpow.pop %v1458
    %v1460 = vmul.f32 %v1365, 1.442695
    %v1461 = vpow.pop %v1460
    %v1462 = vmul.f32 %v1366, 1.442695
    %v1463 = vpow.pop %v1462
    %v1464 = vmul.f32 %v1367, 1.442695
    %v1465 = vpow.pop %v1464
    %v1466 = vmul.f32 %v1368, 1.442695
    %v1467 = vpow.pop %v1466
    %v1468 = vmul.f32 %v1369, 1.442695
    %v1469 = vpow.pop %v1468
    %v1470 = vmul.f32 %v1370, 1.442695
    %v1471 = vpow.pop %v1470
    %v1472 = vmul.f32 %v1371, 1.442695
    %v1473 = vpow.pop %v1472
    %v1474 = vmul.f32 %v1372, 1.442695
    %v1475 = vpow.pop %v1474
    %v1476 = vmul.f32 %v1373, 1.442695
    %v1477 = vpow.pop %v1476
    %v1478 = vmul.f32 %v1374, 1.442695
    %v1479 = vpow.pop %v1478
    %v1480 = vmul.f32 %v1375, 1.442695
    %v1481 = vpow.pop %v1480
    %v1482 = vmul.f32 %v1376, 1.442695
    %v1483 = vpow.pop %v1482
    %v1484 = vmul.f32 %v1377, 1.442695
    %v1485 = vpow.pop %v1484
    %v1486 = vmul.f32 %v1378, 1.442695
    %v1487 = vpow.pop %v1486
    %v1488 = vmul.f32 %v1379, 1.442695
    %v1489 = vpow.pop %v1488
    %v1490 = vmul.f32 %v1380, 1.442695
    %v1491 = vpow.pop %v1490
    %v1492 = vmul.f32 %v1381, 1.442695
    %v1493 = vpow.pop %v1492
    %v1494 = vmul.f32 %v1382, 1.442695
    %v1495 = vpow.pop %v1494
    %v1496 = vmul.f32 %v1383, 1.442695
    %v1497 = vpow.pop %v1496
    %v1498 = vmul.f32 %v1384, 1.442695
    %v1499 = vpow.pop %v1498
    %v1500 = vmul.f32 %v1385, 1.442695
    %v1501 = vpow.pop %v1500
    %v1502 = vmul.f32 %v1386, 1.442695
    %v1503 = vpow.pop %v1502
    %v1504 = vmul.f32 %v1387, 1.442695
    %v1505 = vpow.pop %v1504
    %v1506 = vmul.f32 %v1388, 1.442695
    %v1507 = vpow.pop %v1506
    %v1508 = vmul.f32 %v1389, 1.442695
    %v1509 = vpow.pop %v1508
    %v1510 = vmul.f32 %v1390, 1.442695
    %v1511 = vpow.pop %v1510
    %v1512 = vmul.f32 %v1391, 1.442695
    %v1513 = vpow.pop %v1512
    %v1514 = vmul.f32 %v1392, 1.442695
    %v1515 = vpow.pop %v1514
    %v1516 = vmul.f32 %v1393, 1.442695
    %v1517 = vpow.pop %v1516
    %v1518 = vmul.f32 %v1394, 1.442695
    %v1519 = vpow.pop %v1518
    %v1520 = vmul.f32 %v1395, 1.442695
    %v1521 = vpow.pop %v1520
    %v1522 = vmul.f32 %v1396, 1.442695
    %v1523 = vpow.pop %v1522
    %v1524 = vmul.f32 %v1397, 1.442695
    %v1525 = vpow.pop %v1524
    %v1526 = vld [vmem:[#allocation2] sm:$0xff]
    %v1527 = vld [vmem:[#allocation2 + $0x8] sm:$0xff]
    %v1528 = vmul.f32 %v1399, %v32
    %v1529 = vmul.f32 %v1401, %v33
    %v1530 = vmul.f32 %v1403, %v34
    %v1531 = vmul.f32 %v1405, %v35
    %v1532 = vmul.f32 %v1407, %v32
    %v1533 = vmul.f32 %v1409, %v33
    %v1534 = vmul.f32 %v1411, %v34
    %v1535 = vmul.f32 %v1413, %v35
    %v1536 = vmul.f32 %v1415, %v32
    %v1537 = vmul.f32 %v1417, %v33
    %v1538 = vmul.f32 %v1419, %v34
    %v1539 = vmul.f32 %v1421, %v35
    %v1540 = vmul.f32 %v1423, %v32
    %v1541 = vmul.f32 %v1425, %v33
    %v1542 = vmul.f32 %v1427, %v34
    %v1543 = vmul.f32 %v1429, %v35
    %v1544 = vmul.f32 %v1431, %v32
    %v1545 = vmul.f32 %v1433, %v33
    %v1546 = vmul.f32 %v1435, %v34
    %v1547 = vmul.f32 %v1437, %v35
    %v1548 = vmul.f32 %v1439, %v32
    %v1549 = vmul.f32 %v1441, %v33
    %v1550 = vmul.f32 %v1443, %v34
    %v1551 = vmul.f32 %v1445, %v35
    %v1552 = vmul.f32 %v1447, %v32
    %v1553 = vmul.f32 %v1449, %v33
    %v1554 = vmul.f32 %v1451, %v34
    %v1555 = vmul.f32 %v1453, %v35
    %v1556 = vmul.f32 %v1455, %v32
    %v1557 = vmul.f32 %v1457, %v33
    %v1558 = vmul.f32 %v1459, %v34
    %v1559 = vmul.f32 %v1461, %v35
    %v1560 = vmul.f32 %v1463, %v36
    %v1561 = vmul.f32 %v1465, %v37
    %v1562 = vmul.f32 %v1467, %v38
    %v1563 = vmul.f32 %v1469, %v39
    %v1564 = vmul.f32 %v1471, %v36
    %v1565 = vmul.f32 %v1473, %v37
    %v1566 = vmul.f32 %v1475, %v38
    %v1567 = vmul.f32 %v1477, %v39
    %v1568 = vmul.f32 %v1479, %v36
    %v1569 = vmul.f32 %v1481, %v37
    %v1570 = vmul.f32 %v1483, %v38
    %v1571 = vmul.f32 %v1485, %v39
    %v1572 = vmul.f32 %v1487, %v36
    %v1573 = vmul.f32 %v1489, %v37
    %v1574 = vmul.f32 %v1491, %v38
    %v1575 = vmul.f32 %v1493, %v39
    %v1576 = vmul.f32 %v1495, %v36
    %v1577 = vmul.f32 %v1497, %v37
    %v1578 = vmul.f32 %v1499, %v38
    %v1579 = vmul.f32 %v1501, %v39
    %v1580 = vmul.f32 %v1503, %v36
    %v1581 = vmul.f32 %v1505, %v37
    %v1582 = vmul.f32 %v1507, %v38
    %v1583 = vmul.f32 %v1509, %v39
    %v1584 = vmul.f32 %v1511, %v36
    %v1585 = vmul.f32 %v1513, %v37
    %v1586 = vmul.f32 %v1515, %v38
    %v1587 = vmul.f32 %v1517, %v39
    %v1588 = vmul.f32 %v1519, %v36
    %v1589 = vmul.f32 %v1521, %v37
    %v1590 = vmul.f32 %v1523, %v38
    %v1591 = vmul.f32 %v1525, %v39
    %vm1592 = vcmask 64512
    %v1593 = vsel %vm1592, %v1528, 0.0
    %1594 = vadd.xlane.f32.xlu0 %v1593
    %v1595 = vpop.xlane.xlu0 %1594
    %v1596 = vsel %vm1592, %v1529, 0.0
    %1597 = vadd.xlane.f32.xlu0 %v1596
    %v1598 = vpop.xlane.xlu0 %1597
    %v1599 = vsel %vm1592, %v1530, 0.0
    %1600 = vadd.xlane.f32.xlu0 %v1599
    %v1601 = vpop.xlane.xlu0 %1600
    %v1602 = vsel %vm1592, %v1531, 0.0
    %1603 = vadd.xlane.f32.xlu0 %v1602
    %v1604 = vpop.xlane.xlu0 %1603
    %v1605 = vsel %vm1592, %v1532, 0.0
    %1606 = vadd.xlane.f32.xlu0 %v1605
    %v1607 = vpop.xlane.xlu0 %1606
    %v1608 = vsel %vm1592, %v1533, 0.0
    %1609 = vadd.xlane.f32.xlu0 %v1608
    %v1610 = vpop.xlane.xlu0 %1609
    %v1611 = vsel %vm1592, %v1534, 0.0
    %1612 = vadd.xlane.f32.xlu0 %v1611
    %v1613 = vpop.xlane.xlu0 %1612
    %v1614 = vsel %vm1592, %v1535, 0.0
    %1615 = vadd.xlane.f32.xlu0 %v1614
    %v1616 = vpop.xlane.xlu0 %1615
    %v1617 = vsel %vm1592, %v1536, 0.0
    %1618 = vadd.xlane.f32.xlu0 %v1617
    %v1619 = vpop.xlane.xlu0 %1618
    %v1620 = vsel %vm1592, %v1537, 0.0
    %1621 = vadd.xlane.f32.xlu0 %v1620
    %v1622 = vpop.xlane.xlu0 %1621
    %v1623 = vsel %vm1592, %v1538, 0.0
    %1624 = vadd.xlane.f32.xlu0 %v1623
    %v1625 = vpop.xlane.xlu0 %1624
    %v1626 = vsel %vm1592, %v1539, 0.0
    %1627 = vadd.xlane.f32.xlu0 %v1626
    %v1628 = vpop.xlane.xlu0 %1627
    %v1629 = vsel %vm1592, %v1540, 0.0
    %1630 = vadd.xlane.f32.xlu0 %v1629
    %v1631 = vpop.xlane.xlu0 %1630
    %v1632 = vsel %vm1592, %v1541, 0.0
    %1633 = vadd.xlane.f32.xlu0 %v1632
    %v1634 = vpop.xlane.xlu0 %1633
    %v1635 = vsel %vm1592, %v1542, 0.0
    %1636 = vadd.xlane.f32.xlu0 %v1635
    %v1637 = vpop.xlane.xlu0 %1636
    %v1638 = vsel %vm1592, %v1543, 0.0
    %1639 = vadd.xlane.f32.xlu0 %v1638
    %v1640 = vpop.xlane.xlu0 %1639
    %v1641 = vsel %vm1592, %v1544, 0.0
    %1642 = vadd.xlane.f32.xlu0 %v1641
    %v1643 = vpop.xlane.xlu0 %1642
    %v1644 = vsel %vm1592, %v1545, 0.0
    %1645 = vadd.xlane.f32.xlu0 %v1644
    %v1646 = vpop.xlane.xlu0 %1645
    %v1647 = vsel %vm1592, %v1546, 0.0
    %1648 = vadd.xlane.f32.xlu0 %v1647
    %v1649 = vpop.xlane.xlu0 %1648
    %v1650 = vsel %vm1592, %v1547, 0.0
    %1651 = vadd.xlane.f32.xlu0 %v1650
    %v1652 = vpop.xlane.xlu0 %1651
    %v1653 = vsel %vm1592, %v1548, 0.0
    %1654 = vadd.xlane.f32.xlu0 %v1653
    %v1655 = vpop.xlane.xlu0 %1654
    %v1656 = vsel %vm1592, %v1549, 0.0
    %1657 = vadd.xlane.f32.xlu0 %v1656
    %v1658 = vpop.xlane.xlu0 %1657
    %v1659 = vsel %vm1592, %v1550, 0.0
    %1660 = vadd.xlane.f32.xlu0 %v1659
    %v1661 = vpop.xlane.xlu0 %1660
    %v1662 = vsel %vm1592, %v1551, 0.0
    %1663 = vadd.xlane.f32.xlu0 %v1662
    %v1664 = vpop.xlane.xlu0 %1663
    %v1665 = vsel %vm1592, %v1552, 0.0
    %1666 = vadd.xlane.f32.xlu0 %v1665
    %v1667 = vpop.xlane.xlu0 %1666
    %v1668 = vsel %vm1592, %v1553, 0.0
    %1669 = vadd.xlane.f32.xlu0 %v1668
    %v1670 = vpop.xlane.xlu0 %1669
    %v1671 = vsel %vm1592, %v1554, 0.0
    %1672 = vadd.xlane.f32.xlu0 %v1671
    %v1673 = vpop.xlane.xlu0 %1672
    %v1674 = vsel %vm1592, %v1555, 0.0
    %1675 = vadd.xlane.f32.xlu0 %v1674
    %v1676 = vpop.xlane.xlu0 %1675
    %v1677 = vsel %vm1592, %v1556, 0.0
    %1678 = vadd.xlane.f32.xlu0 %v1677
    %v1679 = vpop.xlane.xlu0 %1678
    %v1680 = vsel %vm1592, %v1557, 0.0
    %1681 = vadd.xlane.f32.xlu0 %v1680
    %v1682 = vpop.xlane.xlu0 %1681
    %v1683 = vsel %vm1592, %v1558, 0.0
    %1684 = vadd.xlane.f32.xlu0 %v1683
    %v1685 = vpop.xlane.xlu0 %1684
    %v1686 = vsel %vm1592, %v1559, 0.0
    %1687 = vadd.xlane.f32.xlu0 %v1686
    %v1688 = vpop.xlane.xlu0 %1687
    %v1689 = vsel %vm1592, %v1560, 0.0
    %1690 = vadd.xlane.f32.xlu0 %v1689
    %v1691 = vpop.xlane.xlu0 %1690
    %v1692 = vsel %vm1592, %v1561, 0.0
    %1693 = vadd.xlane.f32.xlu0 %v1692
    %v1694 = vpop.xlane.xlu0 %1693
    %v1695 = vsel %vm1592, %v1562, 0.0
    %1696 = vadd.xlane.f32.xlu0 %v1695
    %v1697 = vpop.xlane.xlu0 %1696
    %v1698 = vsel %vm1592, %v1563, 0.0
    %1699 = vadd.xlane.f32.xlu0 %v1698
    %v1700 = vpop.xlane.xlu0 %1699
    %v1701 = vsel %vm1592, %v1564, 0.0
    %1702 = vadd.xlane.f32.xlu0 %v1701
    %v1703 = vpop.xlane.xlu0 %1702
    %v1704 = vsel %vm1592, %v1565, 0.0
    %1705 = vadd.xlane.f32.xlu0 %v1704
    %v1706 = vpop.xlane.xlu0 %1705
    %v1707 = vsel %vm1592, %v1566, 0.0
    %1708 = vadd.xlane.f32.xlu0 %v1707
    %v1709 = vpop.xlane.xlu0 %1708
    %v1710 = vsel %vm1592, %v1567, 0.0
    %1711 = vadd.xlane.f32.xlu0 %v1710
    %v1712 = vpop.xlane.xlu0 %1711
    %v1713 = vsel %vm1592, %v1568, 0.0
    %1714 = vadd.xlane.f32.xlu0 %v1713
    %v1715 = vpop.xlane.xlu0 %1714
    %v1716 = vsel %vm1592, %v1569, 0.0
    %1717 = vadd.xlane.f32.xlu0 %v1716
    %v1718 = vpop.xlane.xlu0 %1717
    %v1719 = vsel %vm1592, %v1570, 0.0
    %1720 = vadd.xlane.f32.xlu0 %v1719
    %v1721 = vpop.xlane.xlu0 %1720
    %v1722 = vsel %vm1592, %v1571, 0.0
    %1723 = vadd.xlane.f32.xlu0 %v1722
    %v1724 = vpop.xlane.xlu0 %1723
    %v1725 = vsel %vm1592, %v1572, 0.0
    %1726 = vadd.xlane.f32.xlu0 %v1725
    %v1727 = vpop.xlane.xlu0 %1726
    %v1728 = vsel %vm1592, %v1573, 0.0
    %1729 = vadd.xlane.f32.xlu0 %v1728
    %v1730 = vpop.xlane.xlu0 %1729
    %v1731 = vsel %vm1592, %v1574, 0.0
    %1732 = vadd.xlane.f32.xlu0 %v1731
    %v1733 = vpop.xlane.xlu0 %1732
    %v1734 = vsel %vm1592, %v1575, 0.0
    %1735 = vadd.xlane.f32.xlu0 %v1734
    %v1736 = vpop.xlane.xlu0 %1735
    %v1737 = vsel %vm1592, %v1576, 0.0
    %1738 = vadd.xlane.f32.xlu0 %v1737
    %v1739 = vpop.xlane.xlu0 %1738
    %v1740 = vsel %vm1592, %v1577, 0.0
    %1741 = vadd.xlane.f32.xlu0 %v1740
    %v1742 = vpop.xlane.xlu0 %1741
    %v1743 = vsel %vm1592, %v1578, 0.0
    %1744 = vadd.xlane.f32.xlu0 %v1743
    %v1745 = vpop.xlane.xlu0 %1744
    %v1746 = vsel %vm1592, %v1579, 0.0
    %1747 = vadd.xlane.f32.xlu0 %v1746
    %v1748 = vpop.xlane.xlu0 %1747
    %v1749 = vsel %vm1592, %v1580, 0.0
    %1750 = vadd.xlane.f32.xlu0 %v1749
    %v1751 = vpop.xlane.xlu0 %1750
    %v1752 = vsel %vm1592, %v1581, 0.0
    %1753 = vadd.xlane.f32.xlu0 %v1752
    %v1754 = vpop.xlane.xlu0 %1753
    %v1755 = vsel %vm1592, %v1582, 0.0
    %1756 = vadd.xlane.f32.xlu0 %v1755
    %v1757 = vpop.xlane.xlu0 %1756
    %v1758 = vsel %vm1592, %v1583, 0.0
    %1759 = vadd.xlane.f32.xlu0 %v1758
    %v1760 = vpop.xlane.xlu0 %1759
    %v1761 = vsel %vm1592, %v1584, 0.0
    %1762 = vadd.xlane.f32.xlu0 %v1761
    %v1763 = vpop.xlane.xlu0 %1762
    %v1764 = vsel %vm1592, %v1585, 0.0
    %1765 = vadd.xlane.f32.xlu0 %v1764
    %v1766 = vpop.xlane.xlu0 %1765
    %v1767 = vsel %vm1592, %v1586, 0.0
    %1768 = vadd.xlane.f32.xlu0 %v1767
    %v1769 = vpop.xlane.xlu0 %1768
    %v1770 = vsel %vm1592, %v1587, 0.0
    %1771 = vadd.xlane.f32.xlu0 %v1770
    %v1772 = vpop.xlane.xlu0 %1771
    %v1773 = vsel %vm1592, %v1588, 0.0
    %1774 = vadd.xlane.f32.xlu0 %v1773
    %v1775 = vpop.xlane.xlu0 %1774
    %v1776 = vsel %vm1592, %v1589, 0.0
    %1777 = vadd.xlane.f32.xlu0 %v1776
    %v1778 = vpop.xlane.xlu0 %1777
    %v1779 = vsel %vm1592, %v1590, 0.0
    %1780 = vadd.xlane.f32.xlu0 %v1779
    %v1781 = vpop.xlane.xlu0 %1780
    %v1782 = vsel %vm1592, %v1591, 0.0
    %1783 = vadd.xlane.f32.xlu0 %v1782
    %v1784 = vpop.xlane.xlu0 %1783
    %v1849 = vlaneseq
    %v1850 = vshrl.u32 %v1849, 7
    %v1851 = vsub.s32 %v964, %v1850
    %v1852 = vrot.slane %v1595, %v1851
    %v1853 = vadd.s32 %v964, 4294967288
    %v1854 = vlaneseq
    %v1855 = vshrl.u32 %v1854, 7
    %v1856 = vsub.s32 %v1853, %v1855
    %v1857 = vrot.slane %v1598, %v1856
    %vm1858 = vcmask 130112
    %v1859 = vsel %vm1858, %v1857, %v1852
    %v1860 = vadd.s32 %v964, 4294967280
    %v1861 = vlaneseq
    %v1862 = vshrl.u32 %v1861, 7
    %v1863 = vsub.s32 %v1860, %v1862
    %v1864 = vrot.slane %v1601, %v1863
    %vm1865 = vcmask 195712
    %v1866 = vsel %vm1865, %v1864, %v1859
    %v1867 = vadd.s32 %v964, 4294967272
    %v1868 = vlaneseq
    %v1869 = vshrl.u32 %v1868, 7
    %v1870 = vsub.s32 %v1867, %v1869
    %v1871 = vrot.slane %v1604, %v1870
    %vm1872 = vcmask 261312
    %v1873 = vsel %vm1872, %v1871, %v1866
    %v1874 = vlaneseq
    %v1875 = vshrl.u32 %v1874, 7
    %v1876 = vsub.s32 %v964, %v1875
    %v1877 = vrot.slane %v1607, %v1876
    %v1878 = vlaneseq
    %v1879 = vshrl.u32 %v1878, 7
    %v1880 = vsub.s32 %v1853, %v1879
    %v1881 = vrot.slane %v1610, %v1880
    %v1882 = vsel %vm1858, %v1881, %v1877
    %v1883 = vlaneseq
    %v1884 = vshrl.u32 %v1883, 7
    %v1885 = vsub.s32 %v1860, %v1884
    %v1886 = vrot.slane %v1613, %v1885
    %v1887 = vsel %vm1865, %v1886, %v1882
    %v1888 = vlaneseq
    %v1889 = vshrl.u32 %v1888, 7
    %v1890 = vsub.s32 %v1867, %v1889
    %v1891 = vrot.slane %v1616, %v1890
    %v1892 = vsel %vm1872, %v1891, %v1887
    %v1893 = vlaneseq
    %v1894 = vshrl.u32 %v1893, 7
    %v1895 = vsub.s32 %v964, %v1894
    %v1896 = vrot.slane %v1619, %v1895
    %v1897 = vlaneseq
    %v1898 = vshrl.u32 %v1897, 7
    %v1899 = vsub.s32 %v1853, %v1898
    %v1900 = vrot.slane %v1622, %v1899
    %v1901 = vsel %vm1858, %v1900, %v1896
    %v1902 = vlaneseq
    %v1903 = vshrl.u32 %v1902, 7
    %v1904 = vsub.s32 %v1860, %v1903
    %v1905 = vrot.slane %v1625, %v1904
    %v1906 = vsel %vm1865, %v1905, %v1901
    %v1907 = vlaneseq
    %v1908 = vshrl.u32 %v1907, 7
    %v1909 = vsub.s32 %v1867, %v1908
    %v1910 = vrot.slane %v1628, %v1909
    %v1911 = vsel %vm1872, %v1910, %v1906
    %v1912 = vlaneseq
    %v1913 = vshrl.u32 %v1912, 7
    %v1914 = vsub.s32 %v964, %v1913
    %v1915 = vrot.slane %v1631, %v1914
    %v1916 = vlaneseq
    %v1917 = vshrl.u32 %v1916, 7
    %v1918 = vsub.s32 %v1853, %v1917
    %v1919 = vrot.slane %v1634, %v1918
    %v1920 = vsel %vm1858, %v1919, %v1915
    %v1921 = vlaneseq
    %v1922 = vshrl.u32 %v1921, 7
    %v1923 = vsub.s32 %v1860, %v1922
    %v1924 = vrot.slane %v1637, %v1923
    %v1925 = vsel %vm1865, %v1924, %v1920
    %v1926 = vlaneseq
    %v1927 = vshrl.u32 %v1926, 7
    %v1928 = vsub.s32 %v1867, %v1927
    %v1929 = vrot.slane %v1640, %v1928
    %v1930 = vsel %vm1872, %v1929, %v1925
    %v1931 = vlaneseq
    %v1932 = vshrl.u32 %v1931, 7
    %v1933 = vsub.s32 %v964, %v1932
    %v1934 = vrot.slane %v1643, %v1933
    %v1935 = vlaneseq
    %v1936 = vshrl.u32 %v1935, 7
    %v1937 = vsub.s32 %v1853, %v1936
    %v1938 = vrot.slane %v1646, %v1937
    %v1939 = vsel %vm1858, %v1938, %v1934
    %v1940 = vlaneseq
    %v1941 = vshrl.u32 %v1940, 7
    %v1942 = vsub.s32 %v1860, %v1941
    %v1943 = vrot.slane %v1649, %v1942
    %v1944 = vsel %vm1865, %v1943, %v1939
    %v1945 = vlaneseq
    %v1946 = vshrl.u32 %v1945, 7
    %v1947 = vsub.s32 %v1867, %v1946
    %v1948 = vrot.slane %v1652, %v1947
    %v1949 = vsel %vm1872, %v1948, %v1944
    %v1950 = vlaneseq
    %v1951 = vshrl.u32 %v1950, 7
    %v1952 = vsub.s32 %v964, %v1951
    %v1953 = vrot.slane %v1655, %v1952
    %v1954 = vlaneseq
    %v1955 = vshrl.u32 %v1954, 7
    %v1956 = vsub.s32 %v1853, %v1955
    %v1957 = vrot.slane %v1658, %v1956
    %v1958 = vsel %vm1858, %v1957, %v1953
    %v1959 = vlaneseq
    %v1960 = vshrl.u32 %v1959, 7
    %v1961 = vsub.s32 %v1860, %v1960
    %v1962 = vrot.slane %v1661, %v1961
    %v1963 = vsel %vm1865, %v1962, %v1958
    %v1964 = vlaneseq
    %v1965 = vshrl.u32 %v1964, 7
    %v1966 = vsub.s32 %v1867, %v1965
    %v1967 = vrot.slane %v1664, %v1966
    %v1968 = vsel %vm1872, %v1967, %v1963
    %v1969 = vlaneseq
    %v1970 = vshrl.u32 %v1969, 7
    %v1971 = vsub.s32 %v964, %v1970
    %v1972 = vrot.slane %v1667, %v1971
    %v1973 = vlaneseq
    %v1974 = vshrl.u32 %v1973, 7
    %v1975 = vsub.s32 %v1853, %v1974
    %v1976 = vrot.slane %v1670, %v1975
    %v1977 = vsel %vm1858, %v1976, %v1972
    %v1978 = vlaneseq
    %v1979 = vshrl.u32 %v1978, 7
    %v1980 = vsub.s32 %v1860, %v1979
    %v1981 = vrot.slane %v1673, %v1980
    %v1982 = vsel %vm1865, %v1981, %v1977
    %v1983 = vlaneseq
    %v1984 = vshrl.u32 %v1983, 7
    %v1985 = vsub.s32 %v1867, %v1984
    %v1986 = vrot.slane %v1676, %v1985
    %v1987 = vsel %vm1872, %v1986, %v1982
    %v1988 = vlaneseq
    %v1989 = vshrl.u32 %v1988, 7
    %v1990 = vsub.s32 %v964, %v1989
    %v1991 = vrot.slane %v1679, %v1990
    %v1992 = vlaneseq
    %v1993 = vshrl.u32 %v1992, 7
    %v1994 = vsub.s32 %v1853, %v1993
    %v1995 = vrot.slane %v1682, %v1994
    %v1996 = vsel %vm1858, %v1995, %v1991
    %v1997 = vlaneseq
    %v1998 = vshrl.u32 %v1997, 7
    %v1999 = vsub.s32 %v1860, %v1998
    %v2000 = vrot.slane %v1685, %v1999
    %v2001 = vsel %vm1865, %v2000, %v1996
    %v2002 = vlaneseq
    %v2003 = vshrl.u32 %v2002, 7
    %v2004 = vsub.s32 %v1867, %v2003
    %v2005 = vrot.slane %v1688, %v2004
    %v2006 = vsel %vm1872, %v2005, %v2001
    %v2007 = vlaneseq
    %v2008 = vshrl.u32 %v2007, 7
    %v2009 = vsub.s32 %v964, %v2008
    %v2010 = vrot.slane %v1691, %v2009
    %v2011 = vlaneseq
    %v2012 = vshrl.u32 %v2011, 7
    %v2013 = vsub.s32 %v1853, %v2012
    %v2014 = vrot.slane %v1694, %v2013
    %v2015 = vsel %vm1858, %v2014, %v2010
    %v2016 = vlaneseq
    %v2017 = vshrl.u32 %v2016, 7
    %v2018 = vsub.s32 %v1860, %v2017
    %v2019 = vrot.slane %v1697, %v2018
    %v2020 = vsel %vm1865, %v2019, %v2015
    %v2021 = vlaneseq
    %v2022 = vshrl.u32 %v2021, 7
    %v2023 = vsub.s32 %v1867, %v2022
    %v2024 = vrot.slane %v1700, %v2023
    %v2025 = vsel %vm1872, %v2024, %v2020
    %v2026 = vlaneseq
    %v2027 = vshrl.u32 %v2026, 7
    %v2028 = vsub.s32 %v964, %v2027
    %v2029 = vrot.slane %v1703, %v2028
    %v2030 = vlaneseq
    %v2031 = vshrl.u32 %v2030, 7
    %v2032 = vsub.s32 %v1853, %v2031
    %v2033 = vrot.slane %v1706, %v2032
    %v2034 = vsel %vm1858, %v2033, %v2029
    %v2035 = vlaneseq
    %v2036 = vshrl.u32 %v2035, 7
    %v2037 = vsub.s32 %v1860, %v2036
    %v2038 = vrot.slane %v1709, %v2037
    %v2039 = vsel %vm1865, %v2038, %v2034
    %v2040 = vlaneseq
    %v2041 = vshrl.u32 %v2040, 7
    %v2042 = vsub.s32 %v1867, %v2041
    %v2043 = vrot.slane %v1712, %v2042
    %v2044 = vsel %vm1872, %v2043, %v2039
    %v2045 = vlaneseq
    %v2046 = vshrl.u32 %v2045, 7
    %v2047 = vsub.s32 %v964, %v2046
    %v2048 = vrot.slane %v1715, %v2047
    %v2049 = vlaneseq
    %v2050 = vshrl.u32 %v2049, 7
    %v2051 = vsub.s32 %v1853, %v2050
    %v2052 = vrot.slane %v1718, %v2051
    %v2053 = vsel %vm1858, %v2052, %v2048
    %v2054 = vlaneseq
    %v2055 = vshrl.u32 %v2054, 7
    %v2056 = vsub.s32 %v1860, %v2055
    %v2057 = vrot.slane %v1721, %v2056
    %v2058 = vsel %vm1865, %v2057, %v2053
    %v2059 = vlaneseq
    %v2060 = vshrl.u32 %v2059, 7
    %v2061 = vsub.s32 %v1867, %v2060
    %v2062 = vrot.slane %v1724, %v2061
    %v2063 = vsel %vm1872, %v2062, %v2058
    %v2064 = vlaneseq
    %v2065 = vshrl.u32 %v2064, 7
    %v2066 = vsub.s32 %v964, %v2065
    %v2067 = vrot.slane %v1727, %v2066
    %v2068 = vlaneseq
    %v2069 = vshrl.u32 %v2068, 7
    %v2070 = vsub.s32 %v1853, %v2069
    %v2071 = vrot.slane %v1730, %v2070
    %v2072 = vsel %vm1858, %v2071, %v2067
    %v2073 = vlaneseq
    %v2074 = vshrl.u32 %v2073, 7
    %v2075 = vsub.s32 %v1860, %v2074
    %v2076 = vrot.slane %v1733, %v2075
    %v2077 = vsel %vm1865, %v2076, %v2072
    %v2078 = vlaneseq
    %v2079 = vshrl.u32 %v2078, 7
    %v2080 = vsub.s32 %v1867, %v2079
    %v2081 = vrot.slane %v1736, %v2080
    %v2082 = vsel %vm1872, %v2081, %v2077
    %v2083 = vlaneseq
    %v2084 = vshrl.u32 %v2083, 7
    %v2085 = vsub.s32 %v964, %v2084
    %v2086 = vrot.slane %v1739, %v2085
    %v2087 = vlaneseq
    %v2088 = vshrl.u32 %v2087, 7
    %v2089 = vsub.s32 %v1853, %v2088
    %v2090 = vrot.slane %v1742, %v2089
    %v2091 = vsel %vm1858, %v2090, %v2086
    %v2092 = vlaneseq
    %v2093 = vshrl.u32 %v2092, 7
    %v2094 = vsub.s32 %v1860, %v2093
    %v2095 = vrot.slane %v1745, %v2094
    %v2096 = vsel %vm1865, %v2095, %v2091
    %v2097 = vlaneseq
    %v2098 = vshrl.u32 %v2097, 7
    %v2099 = vsub.s32 %v1867, %v2098
    %v2100 = vrot.slane %v1748, %v2099
    %v2101 = vsel %vm1872, %v2100, %v2096
    %v2102 = vlaneseq
    %v2103 = vshrl.u32 %v2102, 7
    %v2104 = vsub.s32 %v964, %v2103
    %v2105 = vrot.slane %v1751, %v2104
    %v2106 = vlaneseq
    %v2107 = vshrl.u32 %v2106, 7
    %v2108 = vsub.s32 %v1853, %v2107
    %v2109 = vrot.slane %v1754, %v2108
    %v2110 = vsel %vm1858, %v2109, %v2105
    %v2111 = vlaneseq
    %v2112 = vshrl.u32 %v2111, 7
    %v2113 = vsub.s32 %v1860, %v2112
    %v2114 = vrot.slane %v1757, %v2113
    %v2115 = vsel %vm1865, %v2114, %v2110
    %v2116 = vlaneseq
    %v2117 = vshrl.u32 %v2116, 7
    %v2118 = vsub.s32 %v1867, %v2117
    %v2119 = vrot.slane %v1760, %v2118
    %v2120 = vsel %vm1872, %v2119, %v2115
    %v2121 = vlaneseq
    %v2122 = vshrl.u32 %v2121, 7
    %v2123 = vsub.s32 %v964, %v2122
    %v2124 = vrot.slane %v1763, %v2123
    %v2125 = vlaneseq
    %v2126 = vshrl.u32 %v2125, 7
    %v2127 = vsub.s32 %v1853, %v2126
    %v2128 = vrot.slane %v1766, %v2127
    %v2129 = vsel %vm1858, %v2128, %v2124
    %v2130 = vlaneseq
    %v2131 = vshrl.u32 %v2130, 7
    %v2132 = vsub.s32 %v1860, %v2131
    %v2133 = vrot.slane %v1769, %v2132
    %v2134 = vsel %vm1865, %v2133, %v2129
    %v2135 = vlaneseq
    %v2136 = vshrl.u32 %v2135, 7
    %v2137 = vsub.s32 %v1867, %v2136
    %v2138 = vrot.slane %v1772, %v2137
    %v2139 = vsel %vm1872, %v2138, %v2134
    %v2140 = vlaneseq
    %v2141 = vshrl.u32 %v2140, 7
    %v2142 = vsub.s32 %v964, %v2141
    %v2143 = vrot.slane %v1775, %v2142
    %v2144 = vlaneseq
    %v2145 = vshrl.u32 %v2144, 7
    %v2146 = vsub.s32 %v1853, %v2145
    %v2147 = vrot.slane %v1778, %v2146
    %v2148 = vsel %vm1858, %v2147, %v2143
    %v2149 = vlaneseq
    %v2150 = vshrl.u32 %v2149, 7
    %v2151 = vsub.s32 %v1860, %v2150
    %v2152 = vrot.slane %v1781, %v2151
    %v2153 = vsel %vm1865, %v2152, %v2148
    %v2154 = vlaneseq
    %v2155 = vshrl.u32 %v2154, 7
    %v2156 = vsub.s32 %v1867, %v2155
    %v2157 = vrot.slane %v1784, %v2156
    %v2158 = vsel %vm1872, %v2157, %v2153
    %v2159 = vsel %vm973, %v1892, %v1873
    %v2160 = vsel %vm974, %v1911, %v2159
    %v2161 = vsel %vm976, %v1930, %v2160
    %v2162 = vsel %vm978, %v1949, %v2161
    %v2163 = vsel %vm980, %v1968, %v2162
    %v2164 = vsel %vm982, %v1987, %v2163
    %v2165 = vsel %vm984, %v2006, %v2164
    %v2166 = vsel %vm973, %v2044, %v2025
    %v2167 = vsel %vm974, %v2063, %v2166
    %v2168 = vsel %vm976, %v2082, %v2167
    %v2169 = vsel %vm978, %v2101, %v2168
    %v2170 = vsel %vm980, %v2120, %v2169
    %v2171 = vsel %vm982, %v2139, %v2170
    %v2172 = vsel %vm984, %v2158, %v2171
    %v2175 = vadd.f32 %v1526, %v2165
    %v2176 = vadd.f32 %v1527, %v2172
    %2177 = vst.msk [vmem:[#allocation2] sm:$0xff] %vm40, %v2175
    %2178 = vst.msk [vmem:[#allocation2 + $0x8] sm:$0xff] %vm40, %v2176
    // Predicated region
    $region26: #{tpu_custom_call.1} parent=1 // pred_check
      %p2179 = pneg %p21
    $region27: #{tpu_custom_call.1} parent=1 // pred_check_branch
      %2181 = sbr.rel (%p2179) target = $region29
    $region28: #{tpu_custom_call.1} parent=1 // pred_region
      %v2182 = vld [vmem:[%s3] sm:$0xff]
      %v2183 = vld [vmem:[%s3 + $0x8] sm:$0xff]
      %v2184 = vld [vmem:[#allocation2] sm:$0xff]
      %v2185 = vld [vmem:[#allocation2 + $0x8] sm:$0xff]
      %v2186 = vadd.f32 %v2182, %v2184
      %v2187 = vadd.f32 %v2183, %v2185
      %2188 = vst.msk [vmem:[#allocation3] sm:$0xff] %vm40, %v2186
      %2189 = vst.msk [vmem:[#allocation3 + $0x8] sm:$0xff] %vm40, %v2187
    $region29: #{tpu_custom_call.1} parent=1 // pred_fallthru
      _
    // Predicated region
    $region30: #{tpu_custom_call.1} parent=1 // pred_check
      _
    $region31: #{tpu_custom_call.1} parent=1 // pred_check_branch
      %2191 = sbr.rel (0) target = $region33
    $region32: #{tpu_custom_call.1} parent=1 // pred_region
      %s2193 = ssub.s32 256, 256
      %2194 = vsyncadd [#allocation4], %s2193
      %s2195 = sshll.u32 [#allocation3], 4
      %s2196 = int_to_ptr.vmem [resolvable:$true] %s2195
      %2201 = dma.vmem_to_hbm [thread:$0]  %s2196, 256, %s5, [#allocation4], 128, 128, 8
    $region33: #{tpu_custom_call.1} parent=1 // pred_fallthru
      _
    // Predicated region
    $region34: #{tpu_custom_call.1} parent=1 // pred_check
      _
    $region35: #{tpu_custom_call.1} parent=1 // pred_check_branch
      %2203 = sbr.rel (0) target = $region37
    $region36: #{tpu_custom_call.1} parent=1 // pred_region
      %2204 = dma.done [#allocation4], 256
    $region37: #{tpu_custom_call.1} parent=1 // pred_fallthru
      _
    %2205 = vsyncpa [#allocation4], 1

</llo_original>
